<compile_context>
chip_gen: v7x
topology: tpu7x:2x2x1
jax: 0.10.0
libtpu: 0.0.40
codegen_flags: <defaults>
</compile_context>

<pallas_src>
import jax
import jax.numpy as jnp
from jax import lax
from jax.experimental import pallas as pl
from jax.experimental.pallas import tpu as pltpu

KH = KW = 3  # depthwise kernel size

_VMEM_STEP_BUDGET = 6 * 1024 * 1024   # target live bytes per grid step (v7x-safe)
_VMEM_LIMIT = 32 * 1024 * 1024        # explicit scoped-VMEM limit (<= physical everywhere)


def _pick_tiles(h, w, c, in_itemsize):
    """Pick (channel tile, H-row tile) under the per-step VMEM budget.

    Channel tile: 128 when C is a 128-multiple (128-first per review), else full C.
    Row tile: largest divisor of H whose working set (double-buffered in/out blocks at
    the I/O dtype plus ~7 full-tile f32 temporaries) fits the budget.
    """
    tc = 128 if (c % 128 == 0) else c
    per_row = (2 + 8) * in_itemsize * w * tc + 7 * 4 * w * tc
    th = 1
    for cand in range(h, 0, -1):
        if h % cand == 0 and per_row * cand <= _VMEM_STEP_BUDGET:
            th = cand
            break
    return tc, th


def _make_kernel(th, n_h):
    """Builds the fused upsample + depthwise-conv kernel for a given row tiling."""

    def kernel(x_ref, top_ref, bot_ref, wc_ref, o_ref):
        # x_ref:   (1, th, W, Ct)   original-resolution rows, channels on lanes
        # top_ref: (1, 1,  W, Ct)   row above the tile (clamped at the border)
        # bot_ref: (1, 1,  W, Ct)   row below the tile (clamped at the border)
        # wc_ref:  (4, 4, Ct)       pre-combined 2x2 polyphase filters (f32)
        # o_ref:   (1, 4, th, W, Ct) parity-split outputs, o[0, 2*pi+pj, r, s, c]
        ih = pl.program_id(2)
        _, _, w, tc = x_ref.shape

        x = x_ref[0].astype(jnp.float32)                         # (th, W, Ct)
        # Halo rows: neighbouring tile rows; at the image border they are the clamped
        # edge row and must be zeroed to reproduce the conv's zero padding.
        top = top_ref[0].astype(jnp.float32) * jnp.where(ih > 0, 1.0, 0.0)
        bot = bot_ref[0].astype(jnp.float32) * jnp.where(ih < n_h - 1, 1.0, 0.0)
        xh = jnp.concatenate([top, x, bot], axis=0)              # (th+2, W, Ct), outer concat

        # Three W-shifted variants, hoisted (only two sublane relayouts; row offsets
        # below are free outer-axis slices).
        zcol = jnp.zeros((th + 2, 1, tc), jnp.float32)
        xw = (
            jnp.concatenate([zcol, xh[:, : w - 1, :]], axis=1),  # column offset -1
            xh,                                                  # column offset  0
            jnp.concatenate([xh[:, 1:, :], zcol], axis=1),       # column offset +1
        )

        # Hoisted per-lane coefficient vectors: coef[2*pi+pj][2*u+v] -> (1, 1, Ct).
        wc = wc_ref[...]                                         # (4, 4, Ct), f32
        coef = [[wc[p, t].reshape(1, 1, tc) for t in range(4)] for p in range(4)]

        # Four output parities, each written as ONE fused 4-term expression.
        for pi in range(2):
            for pj in range(2):
                p = 2 * pi + pj
                y = (xw[pj][pi:pi + th] * coef[p][0]                  # (u,v)=(0,0)
                     + xw[pj + 1][pi:pi + th] * coef[p][1]            # (0,1)
                     + xw[pj][pi + 1:pi + 1 + th] * coef[p][2]        # (1,0)
                     + xw[pj + 1][pi + 1:pi + 1 + th] * coef[p][3])   # (1,1)
                o_ref[0, p] = y.astype(o_ref.dtype)

    return kernel


def _polyphase_weights(weight, c):
    """Fold the (C,1,3,3) depthwise filter into four 2x2 parity filters (f32).

    Returns wc with shape (4, 4, C): wc[2*pi+pj, 2*u+v, c].
    """
    w3 = jnp.transpose(weight.astype(jnp.float32).reshape(c, KH, KW), (1, 2, 0))  # (3,3,C)

    def groups(p):  # which original taps fold onto offset u (resp. v) for parity p
        return ((0,), (1, 2)) if p == 0 else ((0, 1), (2,))

    rows = []
    for pi in range(2):
        gi = groups(pi)
        for pj in range(2):
            gj = groups(pj)
            taps = []
            for u in range(2):
                for v in range(2):
                    cv = jnp.zeros((c,), jnp.float32)
                    for ki in gi[u]:
                        for kj in gj[v]:
                            cv = cv + w3[ki, kj, :]
                    taps.append(cv)
            rows.append(jnp.stack(taps, axis=0))                 # (4, C)
    return jnp.stack(rows, axis=0)                               # (4, 4, C)


def _up_dwconv_parity(x_nhwc, wc, tc, th):
    """Runs the kernel; returns parity-split output (N, 4, H, W, C)."""
    n, h, w, c = x_nhwc.shape
    n_ct = c // tc
    n_h = h // th
    kernel = _make_kernel(th, n_h)
    itemsize = jnp.dtype(x_nhwc.dtype).itemsize

    cost = pl.CostEstimate(
        flops=32 * n * c * h * w,                       # 16 MACs per input px per channel
        transcendentals=0,
        bytes_accessed=5 * n * c * h * w * itemsize,    # 1x read + 4x write
    )

    return pl.pallas_call(
        kernel,
        out_shape=jax.ShapeDtypeStruct((n, 4, h, w, c), x_nhwc.dtype),
        grid_spec=pltpu.PrefetchScalarGridSpec(
            num_scalar_prefetch=0,
            grid=(n_ct, n, n_h),
            in_specs=[
                # main rows of the tile
                pl.BlockSpec((1, th, w, tc), lambda ic, b, ih: (b, ih, 0, ic)),
                # 1-row halo above (clamped at the border, zero-masked in-kernel)
                pl.BlockSpec((1, 1, w, tc),
                             lambda ic, b, ih: (b, jnp.maximum(ih * th - 1, 0), 0, ic)),
                # 1-row halo below
                pl.BlockSpec((1, 1, w, tc),
                             lambda ic, b, ih: (b, jnp.minimum(ih * th + th, h - 1), 0, ic)),
                # tiny polyphase weight slab; block index constant across inner axes,
                # so it stays VMEM-resident.
                pl.BlockSpec((4, 4, tc), lambda ic, b, ih: (0, 0, ic)),
            ],
            out_specs=pl.BlockSpec((1, 4, th, w, tc),
                                   lambda ic, b, ih: (b, 0, ih, 0, ic)),
        ),
        compiler_params=pltpu.CompilerParams(
            dimension_semantics=("parallel", "parallel", "parallel"),
            vmem_limit_bytes=_VMEM_LIMIT,
            allow_input_fusion=[True, True, True, False],
        ),
        cost_estimate=cost,
    )(x_nhwc, x_nhwc, x_nhwc, wc)


@jax.jit
def learned_up_unit(x, weight):
    """Forward pass of LearnedUpUnit.

    x:      (N, C, H, W)
    weight: (C, 1, 3, 3)  depthwise conv weights (PyTorch layout, groups=C, no bias)
    returns (N, C, 2H, 2W)
    """
    n, c, h, w = x.shape
    ho, wo = 2 * h, 2 * w

    # Layout plumbing (only needed because the interface is NCHW; see TODO at top).
    x_nhwc = jnp.transpose(x, (0, 2, 3, 1))                    # (N, H, W, C)
    wc = _polyphase_weights(weight, c)                         # (4, 4, C) f32

    tc, th = _pick_tiles(h, w, c, jnp.dtype(x.dtype).itemsize)
    out = _up_dwconv_parity(x_nhwc, wc, tc, th)                # (N, 4, H, W, C)

    # Parity interleave + NHWC->NCHW restore, fused into one XLA transpose/reshape.
    out = out.reshape(n, 2, 2, h, w, c)                        # (N, pi, pj, H, W, C)
    return jnp.transpose(out, (0, 5, 3, 1, 4, 2)).reshape(n, c, ho, wo)


def _reference(x, weight):
    """Pure-JAX reference (nearest-2x upsample + grouped conv) for correctness check."""
    c = x.shape[1]
    x_up = jnp.repeat(jnp.repeat(x, 2, axis=2), 2, axis=3)
    return lax.conv_general_dilated(
        x_up, weight,
        window_strides=(1, 1),
        padding=((1, 1), (1, 1)),
        feature_group_count=c,
        dimension_numbers=("NCHW", "OIHW", "NCHW"),
    )


if __name__ == "__main__":
    key = jax.random.PRNGKey(0)
    k_x, k_w = jax.random.split(key)

    N, C, H, W = 2, 4, 16, 16
    x = jax.random.normal(k_x, (N, C, H, W), dtype=jnp.float32)

    # Depthwise weights: (C, 1, 3, 3), PyTorch-style uniform init, fan_in = 9.
    bound = 1.0 / jnp.sqrt(9.0)
    weight = jax.random.uniform(k_w, (C, 1, KH, KW), dtype=jnp.float32,
                                minval=-bound, maxval=bound)

    out = jax.block_until_ready(learned_up_unit(x, weight))
    ref = jax.block_until_ready(_reference(x, weight))

    assert out.shape == (N, C, 2 * H, 2 * W), out.shape
    assert jnp.allclose(out, ref, atol=1e-5, rtol=1e-5), \
        float(jnp.max(jnp.abs(out - ref)))

    print("KERNEL_OK")
</pallas_src>

<mosaic_0001>
module attributes {stable_mosaic.version = 11 : i64} {
  func.func @kernel(%arg0: i32, %arg1: i32, %arg2: i32, %arg3: memref<1x16x16x4xf32, #tpu.memory_space<vmem>>, %arg4: memref<1x1x16x4xf32, #tpu.memory_space<vmem>>, %arg5: memref<1x1x16x4xf32, #tpu.memory_space<vmem>>, %arg6: memref<4x4x4xf32, #tpu.memory_space<vmem>>, %arg7: memref<1x4x16x16x4xf32, #tpu.memory_space<vmem>>) attributes {dimension_semantics = [#tpu.dimension_semantics<parallel>, #tpu.dimension_semantics<parallel>, #tpu.dimension_semantics<parallel>], iteration_bounds = array<i64: 1, 2, 1>, scalar_prefetch = 0 : i64, scratch_operands = 0 : i64, tpu.core_type = #tpu.core_type<tc>, window_params = [{transform_indices = @transform_0, window_bounds = array<i64: 1, 16, 16, 4>}, {transform_indices = @transform_1, window_bounds = array<i64: 1, 1, 16, 4>}, {transform_indices = @transform_2, window_bounds = array<i64: 1, 1, 16, 4>}, {transform_indices = @transform_3, window_bounds = array<i64: 4, 4, 4>}, {transform_indices = @transform_4, window_bounds = array<i64: 1, 4, 16, 16, 4>}]} {
    %c0 = arith.constant 0 : index
    %c0_0 = arith.constant 0 : index
    %c0_1 = arith.constant 0 : index
    %c0_2 = arith.constant 0 : index
    %0 = vector.load %arg3[%c0, %c0_0, %c0_1, %c0_2] : memref<1x16x16x4xf32, #tpu.memory_space<vmem>>, vector<1x16x16x4xf32>
    %1 = vector.shape_cast %0 : vector<1x16x16x4xf32> to vector<16x16x4xf32>
    %c0_3 = arith.constant 0 : index
    %c0_4 = arith.constant 0 : index
    %c0_5 = arith.constant 0 : index
    %c0_6 = arith.constant 0 : index
    %2 = vector.load %arg4[%c0_3, %c0_4, %c0_5, %c0_6] : memref<1x1x16x4xf32, #tpu.memory_space<vmem>>, vector<1x1x16x4xf32>
    %3 = vector.shape_cast %2 : vector<1x1x16x4xf32> to vector<1x16x4xf32>
    %c0_i32 = arith.constant 0 : i32
    %4 = arith.cmpi sgt, %arg2, %c0_i32 : i32
    %cst = arith.constant 1.000000e+00 : f32
    %cst_7 = arith.constant 0.000000e+00 : f32
    %5 = arith.select %4, %cst, %cst_7 : f32
    %6 = vector.broadcast %5 : f32 to vector<1x16x4xf32>
    %7 = arith.mulf %3, %6 : vector<1x16x4xf32>
    %c0_8 = arith.constant 0 : index
    %c0_9 = arith.constant 0 : index
    %c0_10 = arith.constant 0 : index
    %c0_11 = arith.constant 0 : index
    %8 = vector.load %arg5[%c0_8, %c0_9, %c0_10, %c0_11] : memref<1x1x16x4xf32, #tpu.memory_space<vmem>>, vector<1x1x16x4xf32>
    %9 = vector.shape_cast %8 : vector<1x1x16x4xf32> to vector<1x16x4xf32>
    %c0_i32_12 = arith.constant 0 : i32
    %10 = arith.cmpi slt, %arg2, %c0_i32_12 : i32
    %cst_13 = arith.constant 1.000000e+00 : f32
    %cst_14 = arith.constant 0.000000e+00 : f32
    %11 = arith.select %10, %cst_13, %cst_14 : f32
    %12 = vector.broadcast %11 : f32 to vector<1x16x4xf32>
    %13 = arith.mulf %9, %12 : vector<1x16x4xf32>
    %14 = tpu.concatenate %7, %1, %13 in 0 : vector<1x16x4xf32>, vector<16x16x4xf32>, vector<1x16x4xf32> -> vector<18x16x4xf32>
    %cst_15 = arith.constant 0.000000e+00 : f32
    %15 = vector.broadcast %cst_15 : f32 to vector<18x1x4xf32>
    %16 = vector.extract_strided_slice %14 {offsets = [0, 0, 0], sizes = [18, 15, 4], strides = [1, 1, 1]} : vector<18x16x4xf32> to vector<18x15x4xf32>
    %17 = tpu.concatenate %15, %16 in 1 : vector<18x1x4xf32>, vector<18x15x4xf32> -> vector<18x16x4xf32>
    %18 = vector.extract_strided_slice %14 {offsets = [0, 1, 0], sizes = [18, 15, 4], strides = [1, 1, 1]} : vector<18x16x4xf32> to vector<18x15x4xf32>
    %19 = tpu.concatenate %18, %15 in 1 : vector<18x15x4xf32>, vector<18x1x4xf32> -> vector<18x16x4xf32>
    %c0_16 = arith.constant 0 : index
    %c0_17 = arith.constant 0 : index
    %c0_18 = arith.constant 0 : index
    %20 = vector.load %arg6[%c0_16, %c0_17, %c0_18] : memref<4x4x4xf32, #tpu.memory_space<vmem>>, vector<4x4x4xf32>
    %21 = vector.extract_strided_slice %20 {offsets = [0, 0, 0], sizes = [1, 1, 4], strides = [1, 1, 1]} : vector<4x4x4xf32> to vector<1x1x4xf32>
    %22 = vector.shape_cast %21 : vector<1x1x4xf32> to vector<4xf32>
    %23 = vector.shape_cast %22 : vector<4xf32> to vector<1x1x4xf32>
    %24 = vector.extract_strided_slice %20 {offsets = [0, 1, 0], sizes = [1, 1, 4], strides = [1, 1, 1]} : vector<4x4x4xf32> to vector<1x1x4xf32>
    %25 = vector.shape_cast %24 : vector<1x1x4xf32> to vector<4xf32>
    %26 = vector.shape_cast %25 : vector<4xf32> to vector<1x1x4xf32>
    %27 = vector.extract_strided_slice %20 {offsets = [0, 2, 0], sizes = [1, 1, 4], strides = [1, 1, 1]} : vector<4x4x4xf32> to vector<1x1x4xf32>
    %28 = vector.shape_cast %27 : vector<1x1x4xf32> to vector<4xf32>
    %29 = vector.shape_cast %28 : vector<4xf32> to vector<1x1x4xf32>
    %30 = vector.extract_strided_slice %20 {offsets = [0, 3, 0], sizes = [1, 1, 4], strides = [1, 1, 1]} : vector<4x4x4xf32> to vector<1x1x4xf32>
    %31 = vector.shape_cast %30 : vector<1x1x4xf32> to vector<4xf32>
    %32 = vector.shape_cast %31 : vector<4xf32> to vector<1x1x4xf32>
    %33 = vector.extract_strided_slice %20 {offsets = [1, 0, 0], sizes = [1, 1, 4], strides = [1, 1, 1]} : vector<4x4x4xf32> to vector<1x1x4xf32>
    %34 = vector.shape_cast %33 : vector<1x1x4xf32> to vector<4xf32>
    %35 = vector.shape_cast %34 : vector<4xf32> to vector<1x1x4xf32>
    %36 = vector.extract_strided_slice %20 {offsets = [1, 1, 0], sizes = [1, 1, 4], strides = [1, 1, 1]} : vector<4x4x4xf32> to vector<1x1x4xf32>
    %37 = vector.shape_cast %36 : vector<1x1x4xf32> to vector<4xf32>
    %38 = vector.shape_cast %37 : vector<4xf32> to vector<1x1x4xf32>
    %39 = vector.extract_strided_slice %20 {offsets = [1, 2, 0], sizes = [1, 1, 4], strides = [1, 1, 1]} : vector<4x4x4xf32> to vector<1x1x4xf32>
    %40 = vector.shape_cast %39 : vector<1x1x4xf32> to vector<4xf32>
    %41 = vector.shape_cast %40 : vector<4xf32> to vector<1x1x4xf32>
    %42 = vector.extract_strided_slice %20 {offsets = [1, 3, 0], sizes = [1, 1, 4], strides = [1, 1, 1]} : vector<4x4x4xf32> to vector<1x1x4xf32>
    %43 = vector.shape_cast %42 : vector<1x1x4xf32> to vector<4xf32>
    %44 = vector.shape_cast %43 : vector<4xf32> to vector<1x1x4xf32>
    %45 = vector.extract_strided_slice %20 {offsets = [2, 0, 0], sizes = [1, 1, 4], strides = [1, 1, 1]} : vector<4x4x4xf32> to vector<1x1x4xf32>
    %46 = vector.shape_cast %45 : vector<1x1x4xf32> to vector<4xf32>
    %47 = vector.shape_cast %46 : vector<4xf32> to vector<1x1x4xf32>
    %48 = vector.extract_strided_slice %20 {offsets = [2, 1, 0], sizes = [1, 1, 4], strides = [1, 1, 1]} : vector<4x4x4xf32> to vector<1x1x4xf32>
    %49 = vector.shape_cast %48 : vector<1x1x4xf32> to vector<4xf32>
    %50 = vector.shape_cast %49 : vector<4xf32> to vector<1x1x4xf32>
    %51 = vector.extract_strided_slice %20 {offsets = [2, 2, 0], sizes = [1, 1, 4], strides = [1, 1, 1]} : vector<4x4x4xf32> to vector<1x1x4xf32>
    %52 = vector.shape_cast %51 : vector<1x1x4xf32> to vector<4xf32>
    %53 = vector.shape_cast %52 : vector<4xf32> to vector<1x1x4xf32>
    %54 = vector.extract_strided_slice %20 {offsets = [2, 3, 0], sizes = [1, 1, 4], strides = [1, 1, 1]} : vector<4x4x4xf32> to vector<1x1x4xf32>
    %55 = vector.shape_cast %54 : vector<1x1x4xf32> to vector<4xf32>
    %56 = vector.shape_cast %55 : vector<4xf32> to vector<1x1x4xf32>
    %57 = vector.extract_strided_slice %20 {offsets = [3, 0, 0], sizes = [1, 1, 4], strides = [1, 1, 1]} : vector<4x4x4xf32> to vector<1x1x4xf32>
    %58 = vector.shape_cast %57 : vector<1x1x4xf32> to vector<4xf32>
    %59 = vector.shape_cast %58 : vector<4xf32> to vector<1x1x4xf32>
    %60 = vector.extract_strided_slice %20 {offsets = [3, 1, 0], sizes = [1, 1, 4], strides = [1, 1, 1]} : vector<4x4x4xf32> to vector<1x1x4xf32>
    %61 = vector.shape_cast %60 : vector<1x1x4xf32> to vector<4xf32>
    %62 = vector.shape_cast %61 : vector<4xf32> to vector<1x1x4xf32>
    %63 = vector.extract_strided_slice %20 {offsets = [3, 2, 0], sizes = [1, 1, 4], strides = [1, 1, 1]} : vector<4x4x4xf32> to vector<1x1x4xf32>
    %64 = vector.shape_cast %63 : vector<1x1x4xf32> to vector<4xf32>
    %65 = vector.shape_cast %64 : vector<4xf32> to vector<1x1x4xf32>
    %66 = vector.extract_strided_slice %20 {offsets = [3, 3, 0], sizes = [1, 1, 4], strides = [1, 1, 1]} : vector<4x4x4xf32> to vector<1x1x4xf32>
    %67 = vector.shape_cast %66 : vector<1x1x4xf32> to vector<4xf32>
    %68 = vector.shape_cast %67 : vector<4xf32> to vector<1x1x4xf32>
    %69 = vector.extract_strided_slice %17 {offsets = [0, 0, 0], sizes = [16, 16, 4], strides = [1, 1, 1]} : vector<18x16x4xf32> to vector<16x16x4xf32>
    %70 = vector.broadcast %23 : vector<1x1x4xf32> to vector<16x16x4xf32>
    %71 = arith.mulf %69, %70 : vector<16x16x4xf32>
    %72 = vector.extract_strided_slice %14 {offsets = [0, 0, 0], sizes = [16, 16, 4], strides = [1, 1, 1]} : vector<18x16x4xf32> to vector<16x16x4xf32>
    %73 = vector.broadcast %26 : vector<1x1x4xf32> to vector<16x16x4xf32>
    %74 = arith.mulf %72, %73 : vector<16x16x4xf32>
    %75 = arith.addf %71, %74 : vector<16x16x4xf32>
    %76 = vector.extract_strided_slice %17 {offsets = [1, 0, 0], sizes = [16, 16, 4], strides = [1, 1, 1]} : vector<18x16x4xf32> to vector<16x16x4xf32>
    %77 = vector.broadcast %29 : vector<1x1x4xf32> to vector<16x16x4xf32>
    %78 = arith.mulf %76, %77 : vector<16x16x4xf32>
    %79 = arith.addf %75, %78 : vector<16x16x4xf32>
    %80 = vector.extract_strided_slice %14 {offsets = [1, 0, 0], sizes = [16, 16, 4], strides = [1, 1, 1]} : vector<18x16x4xf32> to vector<16x16x4xf32>
    %81 = vector.broadcast %32 : vector<1x1x4xf32> to vector<16x16x4xf32>
    %82 = arith.mulf %80, %81 : vector<16x16x4xf32>
    %83 = arith.addf %79, %82 : vector<16x16x4xf32>
    %c0_19 = arith.constant 0 : index
    %c0_20 = arith.constant 0 : index
    %c0_21 = arith.constant 0 : index
    %c0_22 = arith.constant 0 : index
    %c0_23 = arith.constant 0 : index
    %84 = vector.load %arg7[%c0_19, %c0_20, %c0_21, %c0_22, %c0_23] : memref<1x4x16x16x4xf32, #tpu.memory_space<vmem>>, vector<1x1x16x16x4xf32>
    %85 = vector.shape_cast %84 : vector<1x1x16x16x4xf32> to vector<16x16x4xf32>
    %86 = vector.shape_cast %83 : vector<16x16x4xf32> to vector<1x1x16x16x4xf32>
    tpu.vector_store %arg7[%c0_19, %c0_20, %c0_21, %c0_22, %c0_23], %86 {strides = array<i32>} : memref<1x4x16x16x4xf32, #tpu.memory_space<vmem>>, vector<1x1x16x16x4xf32>,
    %87 = vector.extract_strided_slice %14 {offsets = [0, 0, 0], sizes = [16, 16, 4], strides = [1, 1, 1]} : vector<18x16x4xf32> to vector<16x16x4xf32>
    %88 = vector.broadcast %35 : vector<1x1x4xf32> to vector<16x16x4xf32>
    %89 = arith.mulf %87, %88 : vector<16x16x4xf32>
    %90 = vector.extract_strided_slice %19 {offsets = [0, 0, 0], sizes = [16, 16, 4], strides = [1, 1, 1]} : vector<18x16x4xf32> to vector<16x16x4xf32>
    %91 = vector.broadcast %38 : vector<1x1x4xf32> to vector<16x16x4xf32>
    %92 = arith.mulf %90, %91 : vector<16x16x4xf32>
    %93 = arith.addf %89, %92 : vector<16x16x4xf32>
    %94 = vector.extract_strided_slice %14 {offsets = [1, 0, 0], sizes = [16, 16, 4], strides = [1, 1, 1]} : vector<18x16x4xf32> to vector<16x16x4xf32>
    %95 = vector.broadcast %41 : vector<1x1x4xf32> to vector<16x16x4xf32>
    %96 = arith.mulf %94, %95 : vector<16x16x4xf32>
    %97 = arith.addf %93, %96 : vector<16x16x4xf32>
    %98 = vector.extract_strided_slice %19 {offsets = [1, 0, 0], sizes = [16, 16, 4], strides = [1, 1, 1]} : vector<18x16x4xf32> to vector<16x16x4xf32>
    %99 = vector.broadcast %44 : vector<1x1x4xf32> to vector<16x16x4xf32>
    %100 = arith.mulf %98, %99 : vector<16x16x4xf32>
    %101 = arith.addf %97, %100 : vector<16x16x4xf32>
    %c0_24 = arith.constant 0 : index
    %c1 = arith.constant 1 : index
    %c0_25 = arith.constant 0 : index
    %c0_26 = arith.constant 0 : index
    %c0_27 = arith.constant 0 : index
    %102 = vector.load %arg7[%c0_24, %c1, %c0_25, %c0_26, %c0_27] : memref<1x4x16x16x4xf32, #tpu.memory_space<vmem>>, vector<1x1x16x16x4xf32>
    %103 = vector.shape_cast %102 : vector<1x1x16x16x4xf32> to vector<16x16x4xf32>
    %104 = vector.shape_cast %101 : vector<16x16x4xf32> to vector<1x1x16x16x4xf32>
    tpu.vector_store %arg7[%c0_24, %c1, %c0_25, %c0_26, %c0_27], %104 {strides = array<i32>} : memref<1x4x16x16x4xf32, #tpu.memory_space<vmem>>, vector<1x1x16x16x4xf32>,
    %105 = vector.extract_strided_slice %17 {offsets = [1, 0, 0], sizes = [16, 16, 4], strides = [1, 1, 1]} : vector<18x16x4xf32> to vector<16x16x4xf32>
    %106 = vector.broadcast %47 : vector<1x1x4xf32> to vector<16x16x4xf32>
    %107 = arith.mulf %105, %106 : vector<16x16x4xf32>
    %108 = vector.extract_strided_slice %14 {offsets = [1, 0, 0], sizes = [16, 16, 4], strides = [1, 1, 1]} : vector<18x16x4xf32> to vector<16x16x4xf32>
    %109 = vector.broadcast %50 : vector<1x1x4xf32> to vector<16x16x4xf32>
    %110 = arith.mulf %108, %109 : vector<16x16x4xf32>
    %111 = arith.addf %107, %110 : vector<16x16x4xf32>
    %112 = vector.extract_strided_slice %17 {offsets = [2, 0, 0], sizes = [16, 16, 4], strides = [1, 1, 1]} : vector<18x16x4xf32> to vector<16x16x4xf32>
    %113 = vector.broadcast %53 : vector<1x1x4xf32> to vector<16x16x4xf32>
    %114 = arith.mulf %112, %113 : vector<16x16x4xf32>
    %115 = arith.addf %111, %114 : vector<16x16x4xf32>
    %116 = vector.extract_strided_slice %14 {offsets = [2, 0, 0], sizes = [16, 16, 4], strides = [1, 1, 1]} : vector<18x16x4xf32> to vector<16x16x4xf32>
    %117 = vector.broadcast %56 : vector<1x1x4xf32> to vector<16x16x4xf32>
    %118 = arith.mulf %116, %117 : vector<16x16x4xf32>
    %119 = arith.addf %115, %118 : vector<16x16x4xf32>
    %c0_28 = arith.constant 0 : index
    %c2 = arith.constant 2 : index
    %c0_29 = arith.constant 0 : index
    %c0_30 = arith.constant 0 : index
    %c0_31 = arith.constant 0 : index
    %120 = vector.load %arg7[%c0_28, %c2, %c0_29, %c0_30, %c0_31] : memref<1x4x16x16x4xf32, #tpu.memory_space<vmem>>, vector<1x1x16x16x4xf32>
    %121 = vector.shape_cast %120 : vector<1x1x16x16x4xf32> to vector<16x16x4xf32>
    %122 = vector.shape_cast %119 : vector<16x16x4xf32> to vector<1x1x16x16x4xf32>
    tpu.vector_store %arg7[%c0_28, %c2, %c0_29, %c0_30, %c0_31], %122 {strides = array<i32>} : memref<1x4x16x16x4xf32, #tpu.memory_space<vmem>>, vector<1x1x16x16x4xf32>,
    %123 = vector.extract_strided_slice %14 {offsets = [1, 0, 0], sizes = [16, 16, 4], strides = [1, 1, 1]} : vector<18x16x4xf32> to vector<16x16x4xf32>
    %124 = vector.broadcast %59 : vector<1x1x4xf32> to vector<16x16x4xf32>
    %125 = arith.mulf %123, %124 : vector<16x16x4xf32>
    %126 = vector.extract_strided_slice %19 {offsets = [1, 0, 0], sizes = [16, 16, 4], strides = [1, 1, 1]} : vector<18x16x4xf32> to vector<16x16x4xf32>
    %127 = vector.broadcast %62 : vector<1x1x4xf32> to vector<16x16x4xf32>
    %128 = arith.mulf %126, %127 : vector<16x16x4xf32>
    %129 = arith.addf %125, %128 : vector<16x16x4xf32>
    %130 = vector.extract_strided_slice %14 {offsets = [2, 0, 0], sizes = [16, 16, 4], strides = [1, 1, 1]} : vector<18x16x4xf32> to vector<16x16x4xf32>
    %131 = vector.broadcast %65 : vector<1x1x4xf32> to vector<16x16x4xf32>
    %132 = arith.mulf %130, %131 : vector<16x16x4xf32>
    %133 = arith.addf %129, %132 : vector<16x16x4xf32>
    %134 = vector.extract_strided_slice %19 {offsets = [2, 0, 0], sizes = [16, 16, 4], strides = [1, 1, 1]} : vector<18x16x4xf32> to vector<16x16x4xf32>
    %135 = vector.broadcast %68 : vector<1x1x4xf32> to vector<16x16x4xf32>
    %136 = arith.mulf %134, %135 : vector<16x16x4xf32>
    %137 = arith.addf %133, %136 : vector<16x16x4xf32>
    %c0_32 = arith.constant 0 : index
    %c3 = arith.constant 3 : index
    %c0_33 = arith.constant 0 : index
    %c0_34 = arith.constant 0 : index
    %c0_35 = arith.constant 0 : index
    %138 = vector.load %arg7[%c0_32, %c3, %c0_33, %c0_34, %c0_35] : memref<1x4x16x16x4xf32, #tpu.memory_space<vmem>>, vector<1x1x16x16x4xf32>
    %139 = vector.shape_cast %138 : vector<1x1x16x16x4xf32> to vector<16x16x4xf32>
    %140 = vector.shape_cast %137 : vector<16x16x4xf32> to vector<1x1x16x16x4xf32>
    tpu.vector_store %arg7[%c0_32, %c3, %c0_33, %c0_34, %c0_35], %140 {strides = array<i32>} : memref<1x4x16x16x4xf32, #tpu.memory_space<vmem>>, vector<1x1x16x16x4xf32>,
    return
  }
  func.func @transform_0(%arg0: i32, %arg1: i32, %arg2: i32) -> (i32, i32, i32, i32) {
    %c0_i32 = arith.constant 0 : i32
    %c0_i32_0 = arith.constant 0 : i32
    return %arg1, %arg2, %c0_i32, %arg0 : i32, i32, i32, i32
  }
  func.func @transform_1(%arg0: i32, %arg1: i32, %arg2: i32) -> (i32, i32, i32, i32) {
    %c16_i32 = arith.constant 16 : i32
    %0 = arith.muli %arg2, %c16_i32 : i32
    %c1_i32 = arith.constant 1 : i32
    %1 = arith.subi %0, %c1_i32 : i32
    %c0_i32 = arith.constant 0 : i32
    %2 = arith.maxsi %1, %c0_i32 : i32
    %c0_i32_0 = arith.constant 0 : i32
    %c0_i32_1 = arith.constant 0 : i32
    return %arg1, %2, %c0_i32_0, %arg0 : i32, i32, i32, i32
  }
  func.func @transform_2(%arg0: i32, %arg1: i32, %arg2: i32) -> (i32, i32, i32, i32) {
    %c16_i32 = arith.constant 16 : i32
    %0 = arith.muli %arg2, %c16_i32 : i32
    %c16_i32_0 = arith.constant 16 : i32
    %1 = arith.addi %0, %c16_i32_0 : i32
    %c15_i32 = arith.constant 15 : i32
    %2 = arith.minsi %1, %c15_i32 : i32
    %c0_i32 = arith.constant 0 : i32
    %c0_i32_1 = arith.constant 0 : i32
    return %arg1, %2, %c0_i32, %arg0 : i32, i32, i32, i32
  }
  func.func @transform_3(%arg0: i32, %arg1: i32, %arg2: i32) -> (i32, i32, i32) {
    %c0_i32 = arith.constant 0 : i32
    %c0_i32_0 = arith.constant 0 : i32
    %c0_i32_1 = arith.constant 0 : i32
    return %c0_i32, %c0_i32_0, %arg0 : i32, i32, i32
  }
  func.func @transform_4(%arg0: i32, %arg1: i32, %arg2: i32) -> (i32, i32, i32, i32, i32) {
    %c0_i32 = arith.constant 0 : i32
    %c0_i32_0 = arith.constant 0 : i32
    %c0_i32_1 = arith.constant 0 : i32
    return %arg1, %c0_i32, %arg2, %c0_i32_0, %arg0 : i32, i32, i32, i32, i32
  }
}

</mosaic_0001>

<llo_original>
// kernel: learned_up_unit.2
$region0: #{learned_up_unit.2}
  #allocation0 [shape = 'u32[]', space=smem, size = 0x4, offset = 0x4, fixed_abs, tag = 'smem constant byte address 0x4 - core index']
  #allocation1 [shape = 'u32[144,128]{1,0:T(1,128)}', space=vmem, size = 0x12000, scoped, tag = 'internal scratch']
  %s0 = inlined_call_operand.vmem [shape: f32[4,4,4], index: 0, kind: input, shape index: {}]
  %s1 = inlined_call_operand.vmem [shape: f32[2,4,16,16], index: 1, kind: input, shape index: {}]
  %s2 = inlined_call_operand.vmem [shape: f32[2,4,16,16,4], index: 2, kind: output, shape index: {}]
  %s3 = sld [smem:[#allocation0]]
  $region49: #{learned_up_unit.2} parent=0
    _
  %s5 = ssub.s32 1, %s3
  %s6 = scalar_select 0, %s5, %s3
  loop: start=0, step=1, limit=4
  $region2: #{learned_up_unit.2} parent=0 // loop_pre_header
    _
  $region3: #{learned_up_unit.2} parent=0 // loop_header
    %s8 = sphi 0, %s12
    %p9 = scmp.ge.s32.totalorder %s8, 4
    %s15 = sphi 0, %s34
    %s16 = sphi 0, %s30
    %s17 = sphi 0, %s26
    %s18 = sphi 0, %s15
    %s19 = sphi 0, %s16
    %s20 = sphi 0, %s17
    %s21 = sphi 0, %s18
    %s22 = sphi 0, %s19
    %s23 = sphi 0, %s20
    %s41 = sphi 0, %s43
    %s44 = sphi 0, %s41
    %s45 = sphi 0, %s44
    %s61 = sphi 0, %s45
    %s79 = sphi 0, %s81
    %s82 = sphi 0, %s79
    %s83 = sphi 0, %s82
    %s99 = sphi 0, %s83
    %s117 = sphi 0, %s119
    %s120 = sphi 0, %s117
    %s121 = sphi 0, %s120
    %s137 = sphi 0, %s121
    %s143 = sphi 0, %s145
    %s146 = sphi 0, %s143
    %s147 = sphi 0, %s146
    %s163 = sphi 0, %s147
    %s173 = sphi 0, %s175
    %s176 = sphi 0, %s173
    %s177 = sphi 0, %s176
    %s193 = sphi 0, %s177
  $region4: #{learned_up_unit.2} parent=0 // loop_header_branch
    %11 = sbr.rel (%p9) target = $region8
  $region5: #{learned_up_unit.2} parent=0 // loop_body
    %s13 = ssub.s32 %s8, 1
    %s14 = ssub.s32 %s8, 2
    %s24 = sadd.s32 1, %s17
    %p25 = scmp.ge.s32.totalorder %s24, 1
    %s26 = scalar_select %p25, 0, %s24
    %s27 = sadd.s32 1, %s16
    %s28 = scalar_select %p25, %s27, %s16
    %p29 = scmp.ge.s32.totalorder %s28, 2
    %s30 = scalar_select %p29, 0, %s28
    %s31 = sadd.s32 1, %s15
    %s32 = scalar_select %p29, %s31, %s15
    %p33 = scmp.ge.s32.totalorder %s32, 1
    %s34 = scalar_select %p33, 0, %s32
    %s35 = ssub.s32 %s16, %s30
    %s36 = ssub.s32 %s17, %s26
    %s37 = sor.u32 %s35, %s36
    %s38 = ssub.s32 %s15, %s34
    %s39 = sor.u32 %s37, %s38
    %p40 = scmp.eq.s32.totalorder %s39, 0
    %s42 = sadd.s32 %s41, 1
    %s43 = scalar_select %p40, %s41, %s42
    %p46 = pneg %p40
    %p47 = scmp.eq.s32.totalorder %s8, 1
    %p48 = por %p46, %p47
    %p49 = scmp.ne.s32.totalorder %s41, %s44
    %p50 = scmp.eq.s32.totalorder %s8, 0
    %p51 = por %p49, %p50
    %p52 = scmp.ne.s32.totalorder %s41, %s44
    %p53 = scmp.eq.s32.totalorder %s13, 1
    %p54 = por %p52, %p53
    %p55 = scmp.ne.s32.totalorder %s44, %s45
    %p56 = scmp.eq.s32.totalorder %s13, 0
    %p57 = por %p55, %p56
    %p58 = scmp.ne.s32.totalorder %s44, %s45
    %p59 = scmp.eq.s32.totalorder %s14, 1
    %p60 = por %p58, %p59
    %p62 = scmp.ne.s32.totalorder %s45, %s61
    %p63 = scmp.eq.s32.totalorder %s14, 0
    %p64 = por %p62, %p63
    %s65 = smul.u32 %s17, 16
    %s66 = ssub.s32 %s65, 1
    %p67 = scmp.gt.s32.totalorder %s66, 0
    %s68 = scalar_select %p67, %s66, 0
    %s69 = smul.u32 %s26, 16
    %s70 = ssub.s32 %s69, 1
    %p71 = scmp.gt.s32.totalorder %s70, 0
    %s72 = scalar_select %p71, %s70, 0
    %s73 = ssub.s32 %s16, %s30
    %s74 = ssub.s32 %s68, %s72
    %s75 = sor.u32 %s73, %s74
    %s76 = ssub.s32 %s15, %s34
    %s77 = sor.u32 %s75, %s76
    %p78 = scmp.eq.s32.totalorder %s77, 0
    %s80 = sadd.s32 %s79, 1
    %s81 = scalar_select %p78, %s79, %s80
    %p84 = pneg %p78
    %p85 = scmp.eq.s32.totalorder %s8, 1
    %p86 = por %p84, %p85
    %p87 = scmp.ne.s32.totalorder %s79, %s82
    %p88 = scmp.eq.s32.totalorder %s8, 0
    %p89 = por %p87, %p88
    %p90 = scmp.ne.s32.totalorder %s79, %s82
    %p91 = scmp.eq.s32.totalorder %s13, 1
    %p92 = por %p90, %p91
    %p93 = scmp.ne.s32.totalorder %s82, %s83
    %p94 = scmp.eq.s32.totalorder %s13, 0
    %p95 = por %p93, %p94
    %p96 = scmp.ne.s32.totalorder %s82, %s83
    %p97 = scmp.eq.s32.totalorder %s14, 1
    %p98 = por %p96, %p97
    %p100 = scmp.ne.s32.totalorder %s83, %s99
    %p101 = scmp.eq.s32.totalorder %s14, 0
    %p102 = por %p100, %p101
    %s103 = smul.u32 %s17, 16
    %s104 = sadd.s32 %s103, 16
    %p105 = scmp.lt.s32.totalorder %s104, 15
    %s106 = scalar_select %p105, %s104, 15
    %s107 = smul.u32 %s26, 16
    %s108 = sadd.s32 %s107, 16
    %p109 = scmp.lt.s32.totalorder %s108, 15
    %s110 = scalar_select %p109, %s108, 15
    %s111 = ssub.s32 %s16, %s30
    %s112 = ssub.s32 %s106, %s110
    %s113 = sor.u32 %s111, %s112
    %s114 = ssub.s32 %s15, %s34
    %s115 = sor.u32 %s113, %s114
    %p116 = scmp.eq.s32.totalorder %s115, 0
    %s118 = sadd.s32 %s117, 1
    %s119 = scalar_select %p116, %s117, %s118
    %p122 = pneg %p116
    %p123 = scmp.eq.s32.totalorder %s8, 1
    %p124 = por %p122, %p123
    %p125 = scmp.ne.s32.totalorder %s117, %s120
    %p126 = scmp.eq.s32.totalorder %s8, 0
    %p127 = por %p125, %p126
    %p128 = scmp.ne.s32.totalorder %s117, %s120
    %p129 = scmp.eq.s32.totalorder %s13, 1
    %p130 = por %p128, %p129
    %p131 = scmp.ne.s32.totalorder %s120, %s121
    %p132 = scmp.eq.s32.totalorder %s13, 0
    %p133 = por %p131, %p132
    %p134 = scmp.ne.s32.totalorder %s120, %s121
    %p135 = scmp.eq.s32.totalorder %s14, 1
    %p136 = por %p134, %p135
    %p138 = scmp.ne.s32.totalorder %s121, %s137
    %p139 = scmp.eq.s32.totalorder %s14, 0
    %p140 = por %p138, %p139
    %s141 = ssub.s32 %s15, %s34
    %p142 = scmp.eq.s32.totalorder %s141, 0
    %s144 = sadd.s32 %s143, 1
    %s145 = scalar_select %p142, %s143, %s144
    %p148 = pneg %p142
    %p149 = scmp.eq.s32.totalorder %s8, 1
    %p150 = por %p148, %p149
    %p151 = scmp.ne.s32.totalorder %s143, %s146
    %p152 = scmp.eq.s32.totalorder %s8, 0
    %p153 = por %p151, %p152
    %p154 = scmp.ne.s32.totalorder %s143, %s146
    %p155 = scmp.eq.s32.totalorder %s13, 1
    %p156 = por %p154, %p155
    %p157 = scmp.ne.s32.totalorder %s146, %s147
    %p158 = scmp.eq.s32.totalorder %s13, 0
    %p159 = por %p157, %p158
    %p160 = scmp.ne.s32.totalorder %s146, %s147
    %p161 = scmp.eq.s32.totalorder %s14, 1
    %p162 = por %p160, %p161
    %p164 = scmp.ne.s32.totalorder %s147, %s163
    %p165 = scmp.eq.s32.totalorder %s14, 0
    %p166 = por %p164, %p165
    %s167 = ssub.s32 %s16, %s30
    %s168 = ssub.s32 %s17, %s26
    %s169 = sor.u32 %s167, %s168
    %s170 = ssub.s32 %s15, %s34
    %s171 = sor.u32 %s169, %s170
    %p172 = scmp.eq.s32.totalorder %s171, 0
    %s174 = sadd.s32 %s173, 1
    %s175 = scalar_select %p172, %s173, %s174
    %p178 = pneg %p172
    %p179 = scmp.eq.s32.totalorder %s8, 1
    %p180 = por %p178, %p179
    %p181 = scmp.ne.s32.totalorder %s173, %s176
    %p182 = scmp.eq.s32.totalorder %s8, 0
    %p183 = por %p181, %p182
    %p184 = scmp.ne.s32.totalorder %s173, %s176
    %p185 = scmp.eq.s32.totalorder %s13, 1
    %p186 = por %p184, %p185
    %p187 = scmp.ne.s32.totalorder %s176, %s177
    %p188 = scmp.eq.s32.totalorder %s13, 0
    %p189 = por %p187, %p188
    %p190 = scmp.ne.s32.totalorder %s176, %s177
    %p191 = scmp.eq.s32.totalorder %s14, 1
    %p192 = por %p190, %p191
    %p194 = scmp.ne.s32.totalorder %s177, %s193
    %p195 = scmp.eq.s32.totalorder %s14, 0
    %p196 = por %p194, %p195
    %p197 = scmp.le.s32.totalorder 1, %s8
    %p198 = scmp.lt.s32.totalorder %s8, 3
    %p199 = pnand %p197, %p198
    %p200 = pneg %p199
    // Predicated region
    $region9: #{learned_up_unit.2} parent=5 // pred_check
      _
    $region10: #{learned_up_unit.2} parent=5 // pred_check_branch
      %202 = sbr.rel (%p199) target = $region12
    $region11: #{learned_up_unit.2} parent=5 // pred_region
      %s203 = ssub.s32 %s8, 1
      // Predicated region
      $region13: #{learned_up_unit.2} parent=11 // pred_check
        %p204 = pneg %p159
      $region14: #{learned_up_unit.2} parent=11 // pred_check_branch
        %206 = sbr.rel (%p204) target = $region16
      $region15: #{learned_up_unit.2} parent=11 // pred_region
        %p207 = scmp.lt.s32.totalorder %s18, 0
        %s208 = scalar_select %p207, %s18, 0
        %s209 = smul.addr %s208, 4
        %s210 = scalar_lea.vmem %s0, %s209
      $region16: #{learned_up_unit.2} parent=11 // pred_fallthru
        _
    $region12: #{learned_up_unit.2} parent=5 // pred_fallthru
      _
    %p211 = scmp.lt.s32.totalorder %s8, 2
    // Predicated region
    $region17: #{learned_up_unit.2} parent=5 // pred_check
      %p212 = pneg %p211
    $region18: #{learned_up_unit.2} parent=5 // pred_check_branch
      %214 = sbr.rel (%p212) target = $region20
    $region19: #{learned_up_unit.2} parent=5 // pred_region
      // Predicated region
      $region21: #{learned_up_unit.2} parent=19 // pred_check
        %p215 = pneg %p51
      $region22: #{learned_up_unit.2} parent=19 // pred_check_branch
        %217 = sbr.rel (%p215) target = $region24
      $region23: #{learned_up_unit.2} parent=19 // pred_region
        %s218 = smul.u32 16, %s17
        %p219 = scmp.lt.s32.totalorder %s16, 1
        %s220 = scalar_select %p219, %s16, 1
        %p221 = scmp.lt.s32.totalorder %s218, 15
        %s222 = scalar_select %p221, %s218, 15
        %p223 = scmp.lt.s32.totalorder %s15, 0
        %s224 = scalar_select %p223, %s15, 0
        %s225 = smul.addr %s222, 2
        %s226 = sadd.s32 %s224, %s225
        %s227 = smul.addr %s220, 32
        %s228 = sadd.s32 %s226, %s227
        %s229 = smul.addr %s228, 8
        %s230 = scalar_lea.vmem %s1, %s229
        %s231 = smul.u32 16, %s17
      $region24: #{learned_up_unit.2} parent=19 // pred_fallthru
        _
      // Predicated region
      $region25: #{learned_up_unit.2} parent=19 // pred_check
        %p232 = pneg %p89
      $region26: #{learned_up_unit.2} parent=19 // pred_check_branch
        %234 = sbr.rel (%p232) target = $region28
      $region27: #{learned_up_unit.2} parent=19 // pred_region
        %s235 = smul.u32 %s17, 16
        %s236 = ssub.s32 %s235, 1
        %p237 = scmp.gt.s32.totalorder %s236, 0
        %s238 = scalar_select %p237, %s236, 0
        %p239 = scmp.lt.s32.totalorder %s16, 1
        %s240 = scalar_select %p239, %s16, 1
        %p241 = scmp.lt.s32.totalorder %s238, 15
        %s242 = scalar_select %p241, %s238, 15
        %p243 = scmp.lt.s32.totalorder %s15, 0
        %s244 = scalar_select %p243, %s15, 0
        %s245 = smul.addr %s242, 2
        %s246 = sadd.s32 %s244, %s245
        %s247 = smul.addr %s240, 32
        %s248 = sadd.s32 %s246, %s247
        %s249 = smul.addr %s248, 8
        %s250 = scalar_lea.vmem %s1, %s249
        %s251 = smul.u32 %s17, 16
        %s252 = ssub.s32 %s251, 1
        %p253 = scmp.gt.s32.totalorder %s252, 0
        %s254 = scalar_select %p253, %s252, 0
      $region28: #{learned_up_unit.2} parent=19 // pred_fallthru
        _
      // Predicated region
      $region29: #{learned_up_unit.2} parent=19 // pred_check
        %p255 = pneg %p127
      $region30: #{learned_up_unit.2} parent=19 // pred_check_branch
        %257 = sbr.rel (%p255) target = $region32
      $region31: #{learned_up_unit.2} parent=19 // pred_region
        %s258 = smul.u32 %s17, 16
        %s259 = sadd.s32 %s258, 16
        %p260 = scmp.lt.s32.totalorder %s259, 15
        %s261 = scalar_select %p260, %s259, 15
        %p262 = scmp.lt.s32.totalorder %s16, 1
        %s263 = scalar_select %p262, %s16, 1
        %p264 = scmp.lt.s32.totalorder %s261, 15
        %s265 = scalar_select %p264, %s261, 15
        %p266 = scmp.lt.s32.totalorder %s15, 0
        %s267 = scalar_select %p266, %s15, 0
        %s268 = smul.addr %s265, 2
        %s269 = sadd.s32 %s267, %s268
        %s270 = smul.addr %s263, 32
        %s271 = sadd.s32 %s269, %s270
        %s272 = smul.addr %s271, 8
        %s273 = scalar_lea.vmem %s1, %s272
        %s274 = smul.u32 %s17, 16
        %s275 = sadd.s32 %s274, 16
        %p276 = scmp.lt.s32.totalorder %s275, 15
        %s277 = scalar_select %p276, %s275, 15
      $region32: #{learned_up_unit.2} parent=19 // pred_fallthru
        _
    $region20: #{learned_up_unit.2} parent=5 // pred_fallthru
      _
    %p278 = scmp.le.s32.totalorder 1, %s8
    %p279 = scmp.lt.s32.totalorder %s8, 3
    %p280 = pnand %p278, %p279
    %p281 = pneg %p280
    // Predicated region
    $region33: #{learned_up_unit.2} parent=5 // pred_check
      _
    $region34: #{learned_up_unit.2} parent=5 // pred_check_branch
      %283 = sbr.rel (%p280) target = $region36
    $region35: #{learned_up_unit.2} parent=5 // pred_region
      #allocation2 [shape = 'u8[131072]{0}', space=vmem, size = 0x20000, dematerialized = true, scoped, tag = 'FusionAdapter Buffer %fusion.1 = f32[2,16,16,4]{3,2,1,0:T(8,128)} fusion(%param_1.1), kind=kLoop, calls=%fused_computation.1.clone, metadata={op_name="jit(learned_up_unit)/transpose" stack_frame_id=7}']
      #allocation3 [shape = 'u8[8192]{0}', space=vmem, size = 0x2000, dematerialized = true, scoped, tag = 'FusionAdapter Buffer %fusion.1 = f32[2,16,16,4]{3,2,1,0:T(8,128)} fusion(%param_1.1), kind=kLoop, calls=%fused_computation.1.clone, metadata={op_name="jit(learned_up_unit)/transpose" stack_frame_id=7}']
      #allocation4 [shape = 'u8[8192]{0}', space=vmem, size = 0x2000, dematerialized = true, scoped, tag = 'FusionAdapter Buffer %fusion.1 = f32[2,16,16,4]{3,2,1,0:T(8,128)} fusion(%param_1.1), kind=kLoop, calls=%fused_computation.1.clone, metadata={op_name="jit(learned_up_unit)/transpose" stack_frame_id=7}']
      %s284 = ssub.s32 %s8, 1
      %s285 = smul.u32 16, %s20
      %p286 = scmp.lt.s32.totalorder %s19, 1
      %s287 = scalar_select %p286, %s19, 1
      %p288 = scmp.lt.s32.totalorder %s285, 15
      %s289 = scalar_select %p288, %s285, 15
      %p290 = scmp.lt.s32.totalorder %s18, 0
      %s291 = scalar_select %p290, %s18, 0
      %s292 = smul.addr %s289, 2
      %s293 = sadd.s32 %s291, %s292
      %s294 = smul.addr %s287, 32
      %s295 = sadd.s32 %s293, %s294
      %s296 = smul.addr %s295, 8
      %s297 = scalar_lea.vmem %s1, %s296
      %p298 = pneg %p57
      %p299 = pneg %p54
      %s300 = smul.u32 %s20, 16
      %s301 = ssub.s32 %s300, 1
      %p302 = scmp.gt.s32.totalorder %s301, 0
      %s303 = scalar_select %p302, %s301, 0
      %p304 = scmp.lt.s32.totalorder %s19, 1
      %s305 = scalar_select %p304, %s19, 1
      %p306 = scmp.lt.s32.totalorder %s303, 15
      %s307 = scalar_select %p306, %s303, 15
      %p308 = scmp.lt.s32.totalorder %s18, 0
      %s309 = scalar_select %p308, %s18, 0
      %s310 = smul.addr %s307, 2
      %s311 = sadd.s32 %s309, %s310
      %s312 = smul.addr %s305, 32
      %s313 = sadd.s32 %s311, %s312
      %s314 = smul.addr %s313, 8
      %s315 = scalar_lea.vmem %s1, %s314
      %p316 = pneg %p95
      %p317 = pneg %p92
      %s318 = smul.u32 %s20, 16
      %s319 = sadd.s32 %s318, 16
      %p320 = scmp.lt.s32.totalorder %s319, 15
      %s321 = scalar_select %p320, %s319, 15
      %p322 = scmp.lt.s32.totalorder %s19, 1
      %s323 = scalar_select %p322, %s19, 1
      %p324 = scmp.lt.s32.totalorder %s321, 15
      %s325 = scalar_select %p324, %s321, 15
      %p326 = scmp.lt.s32.totalorder %s18, 0
      %s327 = scalar_select %p326, %s18, 0
      %s328 = smul.addr %s325, 2
      %s329 = sadd.s32 %s327, %s328
      %s330 = smul.addr %s323, 32
      %s331 = sadd.s32 %s329, %s330
      %s332 = smul.addr %s331, 8
      %s333 = scalar_lea.vmem %s1, %s332
      %p334 = pneg %p133
      %p335 = pneg %p130
      %p336 = scmp.lt.s32.totalorder %s18, 0
      %s337 = scalar_select %p336, %s18, 0
      %s338 = smul.addr %s337, 4
      %s339 = scalar_lea.vmem %s0, %s338
      %p340 = pneg %p159
      %p341 = pneg %p156
      %p342 = pneg %p189
      %p343 = pneg %p186
      %s344 = smul.u32 16, %s20
      %p345 = scmp.lt.s32.totalorder %s19, 1
      %s346 = scalar_select %p345, %s19, 1
      %p347 = scmp.lt.s32.totalorder %s344, 15
      %s348 = scalar_select %p347, %s344, 15
      %p349 = scmp.lt.s32.totalorder %s18, 0
      %s350 = scalar_select %p349, %s18, 0
      %s351 = smul.addr %s348, 2
      %s352 = sadd.s32 %s350, %s351
      %s353 = smul.addr %s346, 128
      %s354 = sadd.s32 %s352, %s353
      %s355 = smul.addr %s354, 8
      %s356 = scalar_lea.vmem %s2, %s355
      %s357 = smul.u32 16, %s20
      %p358 = scmp.lt.s32.totalorder %s19, 1
      %s359 = scalar_select %p358, %s19, 1
      %p360 = scmp.lt.s32.totalorder %s357, 15
      %s361 = scalar_select %p360, %s357, 15
      %p362 = scmp.lt.s32.totalorder %s18, 0
      %s363 = scalar_select %p362, %s18, 0
      %s364 = smul.addr %s361, 2
      %s365 = sadd.s32 %s363, %s364
      %s366 = smul.addr %s359, 32
      %s367 = sadd.s32 %s365, %s366
      %s368 = smul.addr %s367, 8
      %s369 = scalar_lea.vmem %s1, %s368
      %s370 = smul.u32 16, %s20
      %s371 = smul.u32 %s20, 16
      %s372 = ssub.s32 %s371, 1
      %p373 = scmp.gt.s32.totalorder %s372, 0
      %s374 = scalar_select %p373, %s372, 0
      %p375 = scmp.lt.s32.totalorder %s19, 1
      %s376 = scalar_select %p375, %s19, 1
      %p377 = scmp.lt.s32.totalorder %s374, 15
      %s378 = scalar_select %p377, %s374, 15
      %p379 = scmp.lt.s32.totalorder %s18, 0
      %s380 = scalar_select %p379, %s18, 0
      %s381 = smul.addr %s378, 2
      %s382 = sadd.s32 %s380, %s381
      %s383 = smul.addr %s376, 32
      %s384 = sadd.s32 %s382, %s383
      %s385 = smul.addr %s384, 8
      %s386 = scalar_lea.vmem %s1, %s385
      %s387 = smul.u32 %s20, 16
      %s388 = ssub.s32 %s387, 1
      %p389 = scmp.gt.s32.totalorder %s388, 0
      %s390 = scalar_select %p389, %s388, 0
      %s391 = smul.u32 %s20, 16
      %s392 = sadd.s32 %s391, 16
      %p393 = scmp.lt.s32.totalorder %s392, 15
      %s394 = scalar_select %p393, %s392, 15
      %p395 = scmp.lt.s32.totalorder %s19, 1
      %s396 = scalar_select %p395, %s19, 1
      %p397 = scmp.lt.s32.totalorder %s394, 15
      %s398 = scalar_select %p397, %s394, 15
      %p399 = scmp.lt.s32.totalorder %s18, 0
      %s400 = scalar_select %p399, %s18, 0
      %s401 = smul.addr %s398, 2
      %s402 = sadd.s32 %s400, %s401
      %s403 = smul.addr %s396, 32
      %s404 = sadd.s32 %s402, %s403
      %s405 = smul.addr %s404, 8
      %s406 = scalar_lea.vmem %s1, %s405
      %s407 = smul.u32 %s20, 16
      %s408 = sadd.s32 %s407, 16
      %p409 = scmp.lt.s32.totalorder %s408, 15
      %s410 = scalar_select %p409, %s408, 15
      %p411 = scmp.lt.s32.totalorder %s18, 0
      %s412 = scalar_select %p411, %s18, 0
      %s413 = smul.addr %s412, 4
      %s414 = scalar_lea.vmem %s0, %s413
      %s415 = smul.u32 16, %s20
      %p416 = scmp.lt.s32.totalorder %s19, 1
      %s417 = scalar_select %p416, %s19, 1
      %p418 = scmp.lt.s32.totalorder %s415, 15
      %s419 = scalar_select %p418, %s415, 15
      %p420 = scmp.lt.s32.totalorder %s18, 0
      %s421 = scalar_select %p420, %s18, 0
      %s422 = smul.addr %s419, 2
      %s423 = sadd.s32 %s421, %s422
      %s424 = smul.addr %s417, 128
      %s425 = sadd.s32 %s423, %s424
      %s426 = smul.addr %s425, 8
      %s427 = scalar_lea.vmem %s2, %s426
      %s428 = smul.u32 16, %s20
      %v429 = vld [vmem:[%s369] sm:$0xff]
      %431 = vst [vmem:[#allocation2] sm:$0xff] %v429
      %s432 = scalar_lea.vmem %s369, 8
      %v433 = vld [vmem:[%s432] sm:$0xff]
      %s434 = scalar_lea.vmem [#allocation2], 8
      %436 = vst [vmem:[%s434] sm:$0xff] %v433
      %s437 = scalar_lea.vmem %s369, 16
      %v438 = vld [vmem:[%s437] sm:$0xff]
      %s439 = scalar_lea.vmem [#allocation2], 16
      %441 = vst [vmem:[%s439] sm:$0xff] %v438
      %s442 = scalar_lea.vmem %s369, 24
      %v443 = vld [vmem:[%s442] sm:$0xff]
      %s444 = scalar_lea.vmem [#allocation2], 24
      %446 = vst [vmem:[%s444] sm:$0xff] %v443
      %s447 = scalar_lea.vmem %s369, 32
      %v448 = vld [vmem:[%s447] sm:$0xff]
      %s449 = scalar_lea.vmem [#allocation2], 32
      %451 = vst [vmem:[%s449] sm:$0xff] %v448
      %s452 = scalar_lea.vmem %s369, 40
      %v453 = vld [vmem:[%s452] sm:$0xff]
      %s454 = scalar_lea.vmem [#allocation2], 40
      %456 = vst [vmem:[%s454] sm:$0xff] %v453
      %s457 = scalar_lea.vmem %s369, 48
      %v458 = vld [vmem:[%s457] sm:$0xff]
      %s459 = scalar_lea.vmem [#allocation2], 48
      %461 = vst [vmem:[%s459] sm:$0xff] %v458
      %s462 = scalar_lea.vmem %s369, 56
      %v463 = vld [vmem:[%s462] sm:$0xff]
      %s464 = scalar_lea.vmem [#allocation2], 56
      %466 = vst [vmem:[%s464] sm:$0xff] %v463
      %s467 = scalar_lea.vmem %s369, 64
      %v468 = vld [vmem:[%s467] sm:$0xff]
      %s469 = scalar_lea.vmem [#allocation2], 64
      %471 = vst [vmem:[%s469] sm:$0xff] %v468
      %s472 = scalar_lea.vmem %s369, 72
      %v473 = vld [vmem:[%s472] sm:$0xff]
      %s474 = scalar_lea.vmem [#allocation2], 72
      %476 = vst [vmem:[%s474] sm:$0xff] %v473
      %s477 = scalar_lea.vmem %s369, 80
      %v478 = vld [vmem:[%s477] sm:$0xff]
      %s479 = scalar_lea.vmem [#allocation2], 80
      %481 = vst [vmem:[%s479] sm:$0xff] %v478
      %s482 = scalar_lea.vmem %s369, 88
      %v483 = vld [vmem:[%s482] sm:$0xff]
      %s484 = scalar_lea.vmem [#allocation2], 88
      %486 = vst [vmem:[%s484] sm:$0xff] %v483
      %s487 = scalar_lea.vmem %s369, 96
      %v488 = vld [vmem:[%s487] sm:$0xff]
      %s489 = scalar_lea.vmem [#allocation2], 96
      %491 = vst [vmem:[%s489] sm:$0xff] %v488
      %s492 = scalar_lea.vmem %s369, 104
      %v493 = vld [vmem:[%s492] sm:$0xff]
      %s494 = scalar_lea.vmem [#allocation2], 104
      %496 = vst [vmem:[%s494] sm:$0xff] %v493
      %s497 = scalar_lea.vmem %s369, 112
      %v498 = vld [vmem:[%s497] sm:$0xff]
      %s499 = scalar_lea.vmem [#allocation2], 112
      %501 = vst [vmem:[%s499] sm:$0xff] %v498
      %s502 = scalar_lea.vmem %s369, 120
      %v503 = vld [vmem:[%s502] sm:$0xff]
      %s504 = scalar_lea.vmem [#allocation2], 120
      %506 = vst [vmem:[%s504] sm:$0xff] %v503
      %s507 = scalar_lea.vmem %s369, 128
      %v508 = vld [vmem:[%s507] sm:$0xff]
      %s509 = scalar_lea.vmem [#allocation2], 128
      %511 = vst [vmem:[%s509] sm:$0xff] %v508
      %s512 = scalar_lea.vmem %s369, 136
      %v513 = vld [vmem:[%s512] sm:$0xff]
      %s514 = scalar_lea.vmem [#allocation2], 136
      %516 = vst [vmem:[%s514] sm:$0xff] %v513
      %s517 = scalar_lea.vmem %s369, 144
      %v518 = vld [vmem:[%s517] sm:$0xff]
      %s519 = scalar_lea.vmem [#allocation2], 144
      %521 = vst [vmem:[%s519] sm:$0xff] %v518
      %s522 = scalar_lea.vmem %s369, 152
      %v523 = vld [vmem:[%s522] sm:$0xff]
      %s524 = scalar_lea.vmem [#allocation2], 152
      %526 = vst [vmem:[%s524] sm:$0xff] %v523
      %s527 = scalar_lea.vmem %s369, 160
      %v528 = vld [vmem:[%s527] sm:$0xff]
      %s529 = scalar_lea.vmem [#allocation2], 160
      %531 = vst [vmem:[%s529] sm:$0xff] %v528
      %s532 = scalar_lea.vmem %s369, 168
      %v533 = vld [vmem:[%s532] sm:$0xff]
      %s534 = scalar_lea.vmem [#allocation2], 168
      %536 = vst [vmem:[%s534] sm:$0xff] %v533
      %s537 = scalar_lea.vmem %s369, 176
      %v538 = vld [vmem:[%s537] sm:$0xff]
      %s539 = scalar_lea.vmem [#allocation2], 176
      %541 = vst [vmem:[%s539] sm:$0xff] %v538
      %s542 = scalar_lea.vmem %s369, 184
      %v543 = vld [vmem:[%s542] sm:$0xff]
      %s544 = scalar_lea.vmem [#allocation2], 184
      %546 = vst [vmem:[%s544] sm:$0xff] %v543
      %s547 = scalar_lea.vmem %s369, 192
      %v548 = vld [vmem:[%s547] sm:$0xff]
      %s549 = scalar_lea.vmem [#allocation2], 192
      %551 = vst [vmem:[%s549] sm:$0xff] %v548
      %s552 = scalar_lea.vmem %s369, 200
      %v553 = vld [vmem:[%s552] sm:$0xff]
      %s554 = scalar_lea.vmem [#allocation2], 200
      %556 = vst [vmem:[%s554] sm:$0xff] %v553
      %s557 = scalar_lea.vmem %s369, 208
      %v558 = vld [vmem:[%s557] sm:$0xff]
      %s559 = scalar_lea.vmem [#allocation2], 208
      %561 = vst [vmem:[%s559] sm:$0xff] %v558
      %s562 = scalar_lea.vmem %s369, 216
      %v563 = vld [vmem:[%s562] sm:$0xff]
      %s564 = scalar_lea.vmem [#allocation2], 216
      %566 = vst [vmem:[%s564] sm:$0xff] %v563
      %s567 = scalar_lea.vmem %s369, 224
      %v568 = vld [vmem:[%s567] sm:$0xff]
      %s569 = scalar_lea.vmem [#allocation2], 224
      %571 = vst [vmem:[%s569] sm:$0xff] %v568
      %s572 = scalar_lea.vmem %s369, 232
      %v573 = vld [vmem:[%s572] sm:$0xff]
      %s574 = scalar_lea.vmem [#allocation2], 232
      %576 = vst [vmem:[%s574] sm:$0xff] %v573
      %s577 = scalar_lea.vmem %s369, 240
      %v578 = vld [vmem:[%s577] sm:$0xff]
      %s579 = scalar_lea.vmem [#allocation2], 240
      %581 = vst [vmem:[%s579] sm:$0xff] %v578
      %s582 = scalar_lea.vmem %s369, 248
      %v583 = vld [vmem:[%s582] sm:$0xff]
      %s584 = scalar_lea.vmem [#allocation2], 248
      %586 = vst [vmem:[%s584] sm:$0xff] %v583
      %v587 = vld [vmem:[%s386] sm:$0xff]
      %589 = vst [vmem:[#allocation3] sm:$0xff] %v587
      %s590 = scalar_lea.vmem %s386, 8
      %v591 = vld [vmem:[%s590] sm:$0xff]
      %s592 = scalar_lea.vmem [#allocation3], 8
      %594 = vst [vmem:[%s592] sm:$0xff] %v591
      %v595 = vld [vmem:[%s406] sm:$0xff]
      %597 = vst [vmem:[#allocation4] sm:$0xff] %v595
      %s598 = scalar_lea.vmem %s406, 8
      %v599 = vld [vmem:[%s598] sm:$0xff]
      %s600 = scalar_lea.vmem [#allocation4], 8
      %602 = vst [vmem:[%s600] sm:$0xff] %v599
      %v603 = vld [vmem:[#allocation2] sm:$0xff]
      %v604 = vld [vmem:[#allocation2 + $0x8] sm:$0xff]
      %v605 = vld [vmem:[#allocation2 + $0x10] sm:$0xff]
      %v606 = vld [vmem:[#allocation2 + $0x18] sm:$0xff]
      %v607 = vld [vmem:[#allocation2 + $0x20] sm:$0xff]
      %v608 = vld [vmem:[#allocation2 + $0x28] sm:$0xff]
      %v609 = vld [vmem:[#allocation2 + $0x30] sm:$0xff]
      %v610 = vld [vmem:[#allocation2 + $0x38] sm:$0xff]
      %v611 = vld [vmem:[#allocation2 + $0x40] sm:$0xff]
      %v612 = vld [vmem:[#allocation2 + $0x48] sm:$0xff]
      %v613 = vld [vmem:[#allocation2 + $0x50] sm:$0xff]
      %v614 = vld [vmem:[#allocation2 + $0x58] sm:$0xff]
      %v615 = vld [vmem:[#allocation2 + $0x60] sm:$0xff]
      %v616 = vld [vmem:[#allocation2 + $0x68] sm:$0xff]
      %v617 = vld [vmem:[#allocation2 + $0x70] sm:$0xff]
      %v618 = vld [vmem:[#allocation2 + $0x78] sm:$0xff]
      %v619 = vld [vmem:[#allocation2 + $0x80] sm:$0xff]
      %v620 = vld [vmem:[#allocation2 + $0x88] sm:$0xff]
      %v621 = vld [vmem:[#allocation2 + $0x90] sm:$0xff]
      %v622 = vld [vmem:[#allocation2 + $0x98] sm:$0xff]
      %v623 = vld [vmem:[#allocation2 + $0xa0] sm:$0xff]
      %v624 = vld [vmem:[#allocation2 + $0xa8] sm:$0xff]
      %v625 = vld [vmem:[#allocation2 + $0xb0] sm:$0xff]
      %v626 = vld [vmem:[#allocation2 + $0xb8] sm:$0xff]
      %v627 = vld [vmem:[#allocation2 + $0xc0] sm:$0xff]
      %v628 = vld [vmem:[#allocation2 + $0xc8] sm:$0xff]
      %v629 = vld [vmem:[#allocation2 + $0xd0] sm:$0xff]
      %v630 = vld [vmem:[#allocation2 + $0xd8] sm:$0xff]
      %v631 = vld [vmem:[#allocation2 + $0xe0] sm:$0xff]
      %v632 = vld [vmem:[#allocation2 + $0xe8] sm:$0xff]
      %v633 = vld [vmem:[#allocation2 + $0xf0] sm:$0xff]
      %v634 = vld [vmem:[#allocation2 + $0xf8] sm:$0xff]
      %v635 = vld [vmem:[#allocation3] sm:$0xff]
      %v636 = vld [vmem:[#allocation3 + $0x8] sm:$0xff]
      %p637 = scmp.gt.s32.totalorder %s20, 0
      %s638 = scalar_select %p637, 1.0, 0.0
      %v639 = vstv %s638
      %v640 = vmul.f32 %v635, %v639
      %v641 = vmul.f32 %v636, %v639
      %v642 = vld [vmem:[#allocation4] sm:$0xff]
      %v643 = vld [vmem:[#allocation4 + $0x8] sm:$0xff]
      %p644 = scmp.lt.s32.totalorder %s20, 0
      %s645 = scalar_select %p644, 1.0, 0.0
      %v646 = vstv %s645
      %v647 = vmul.f32 %v642, %v646
      %v648 = vmul.f32 %v643, %v646
      %vm685 = vcmask 1040384
      %v686 = vrot.slane %v640, 7
      %v687 = vrot.slane %v641, 7
      %v688 = vsel %vm685, %v686, %v687
      %v689 = vrot.slane %v603, 7
      %v690 = vrot.slane %v604, 7
      %v691 = vsel %vm685, %v689, %v690
      %v692 = vrot.slane %v605, 7
      %v693 = vrot.slane %v606, 7
      %v694 = vsel %vm685, %v692, %v693
      %v695 = vrot.slane %v607, 7
      %v696 = vrot.slane %v608, 7
      %v697 = vsel %vm685, %v695, %v696
      %v698 = vrot.slane %v609, 7
      %v699 = vrot.slane %v610, 7
      %v700 = vsel %vm685, %v698, %v699
      %v701 = vrot.slane %v611, 7
      %v702 = vrot.slane %v612, 7
      %v703 = vsel %vm685, %v701, %v702
      %v704 = vrot.slane %v613, 7
      %v705 = vrot.slane %v614, 7
      %v706 = vsel %vm685, %v704, %v705
      %v707 = vrot.slane %v615, 7
      %v708 = vrot.slane %v616, 7
      %v709 = vsel %vm685, %v707, %v708
      %v710 = vrot.slane %v617, 7
      %v711 = vrot.slane %v618, 7
      %v712 = vsel %vm685, %v710, %v711
      %v713 = vrot.slane %v619, 7
      %v714 = vrot.slane %v620, 7
      %v715 = vsel %vm685, %v713, %v714
      %v716 = vrot.slane %v621, 7
      %v717 = vrot.slane %v622, 7
      %v718 = vsel %vm685, %v716, %v717
      %v719 = vrot.slane %v623, 7
      %v720 = vrot.slane %v624, 7
      %v721 = vsel %vm685, %v719, %v720
      %v722 = vrot.slane %v625, 7
      %v723 = vrot.slane %v626, 7
      %v724 = vsel %vm685, %v722, %v723
      %v725 = vrot.slane %v627, 7
      %v726 = vrot.slane %v628, 7
      %v727 = vsel %vm685, %v725, %v726
      %v728 = vrot.slane %v629, 7
      %v729 = vrot.slane %v630, 7
      %v730 = vsel %vm685, %v728, %v729
      %v731 = vrot.slane %v631, 7
      %v732 = vrot.slane %v632, 7
      %v733 = vsel %vm685, %v731, %v732
      %v734 = vrot.slane %v633, 7
      %v735 = vrot.slane %v634, 7
      %v736 = vsel %vm685, %v734, %v735
      %v737 = vrot.slane %v647, 7
      %v738 = vrot.slane %v648, 7
      %v739 = vsel %vm685, %v737, %v738
      %v776 = vsel %vm685, 0.0, %v686
      %v777 = vsel %vm685, 0.0, %v689
      %v778 = vsel %vm685, 0.0, %v692
      %v779 = vsel %vm685, 0.0, %v695
      %v780 = vsel %vm685, 0.0, %v698
      %v781 = vsel %vm685, 0.0, %v701
      %v782 = vsel %vm685, 0.0, %v704
      %v783 = vsel %vm685, 0.0, %v707
      %v784 = vsel %vm685, 0.0, %v710
      %v785 = vsel %vm685, 0.0, %v713
      %v786 = vsel %vm685, 0.0, %v716
      %v787 = vsel %vm685, 0.0, %v719
      %v788 = vsel %vm685, 0.0, %v722
      %v789 = vsel %vm685, 0.0, %v725
      %v790 = vsel %vm685, 0.0, %v728
      %v791 = vsel %vm685, 0.0, %v731
      %v792 = vsel %vm685, 0.0, %v734
      %v793 = vsel %vm685, 0.0, %v737
      %vm794 = vcmask 1046528
      %v795 = vrot.slane %v640, 1
      %v796 = vrot.slane %v641, 1
      %v797 = vsel %vm794, %v795, %v796
      %v798 = vrot.slane %v603, 1
      %v799 = vrot.slane %v604, 1
      %v800 = vsel %vm794, %v798, %v799
      %v801 = vrot.slane %v605, 1
      %v802 = vrot.slane %v606, 1
      %v803 = vsel %vm794, %v801, %v802
      %v804 = vrot.slane %v607, 1
      %v805 = vrot.slane %v608, 1
      %v806 = vsel %vm794, %v804, %v805
      %v807 = vrot.slane %v609, 1
      %v808 = vrot.slane %v610, 1
      %v809 = vsel %vm794, %v807, %v808
      %v810 = vrot.slane %v611, 1
      %v811 = vrot.slane %v612, 1
      %v812 = vsel %vm794, %v810, %v811
      %v813 = vrot.slane %v613, 1
      %v814 = vrot.slane %v614, 1
      %v815 = vsel %vm794, %v813, %v814
      %v816 = vrot.slane %v615, 1
      %v817 = vrot.slane %v616, 1
      %v818 = vsel %vm794, %v816, %v817
      %v819 = vrot.slane %v617, 1
      %v820 = vrot.slane %v618, 1
      %v821 = vsel %vm794, %v819, %v820
      %v822 = vrot.slane %v619, 1
      %v823 = vrot.slane %v620, 1
      %v824 = vsel %vm794, %v822, %v823
      %v825 = vrot.slane %v621, 1
      %v826 = vrot.slane %v622, 1
      %v827 = vsel %vm794, %v825, %v826
      %v828 = vrot.slane %v623, 1
      %v829 = vrot.slane %v624, 1
      %v830 = vsel %vm794, %v828, %v829
      %v831 = vrot.slane %v625, 1
      %v832 = vrot.slane %v626, 1
      %v833 = vsel %vm794, %v831, %v832
      %v834 = vrot.slane %v627, 1
      %v835 = vrot.slane %v628, 1
      %v836 = vsel %vm794, %v834, %v835
      %v837 = vrot.slane %v629, 1
      %v838 = vrot.slane %v630, 1
      %v839 = vsel %vm794, %v837, %v838
      %v840 = vrot.slane %v631, 1
      %v841 = vrot.slane %v632, 1
      %v842 = vsel %vm794, %v840, %v841
      %v843 = vrot.slane %v633, 1
      %v844 = vrot.slane %v634, 1
      %v845 = vsel %vm794, %v843, %v844
      %v846 = vrot.slane %v647, 1
      %v847 = vrot.slane %v648, 1
      %v848 = vsel %vm794, %v846, %v847
      %v885 = vsel %vm794, %v796, 0.0
      %v886 = vsel %vm794, %v799, 0.0
      %v887 = vsel %vm794, %v802, 0.0
      %v888 = vsel %vm794, %v805, 0.0
      %v889 = vsel %vm794, %v808, 0.0
      %v890 = vsel %vm794, %v811, 0.0
      %v891 = vsel %vm794, %v814, 0.0
      %v892 = vsel %vm794, %v817, 0.0
      %v893 = vsel %vm794, %v820, 0.0
      %v894 = vsel %vm794, %v823, 0.0
      %v895 = vsel %vm794, %v826, 0.0
      %v896 = vsel %vm794, %v829, 0.0
      %v897 = vsel %vm794, %v832, 0.0
      %v898 = vsel %vm794, %v835, 0.0
      %v899 = vsel %vm794, %v838, 0.0
      %v900 = vsel %vm794, %v841, 0.0
      %v901 = vsel %vm794, %v844, 0.0
      %v902 = vsel %vm794, %v847, 0.0
      %v903 = vld [vmem:[%s414] sm:$0xf]
      %v904 = vld [vmem:[%s414 + $0x4] sm:$0xf]
      %v905 = vld [vmem:[%s414 + $0x8] sm:$0xf]
      %v906 = vld [vmem:[%s414 + $0xc] sm:$0xf]
      %v907 = vlaneseq
      %v908 = vshrl.u32 %v907, 7
      %v909 = vsub.s32 0, %v908
      %v910 = vrot.slane %v903, %v909
      %v911 = vmul.f32 %v776, %v910
      %v912 = vmul.f32 %v688, %v910
      %v913 = vmul.f32 %v777, %v910
      %v914 = vmul.f32 %v691, %v910
      %v915 = vmul.f32 %v778, %v910
      %v916 = vmul.f32 %v694, %v910
      %v917 = vmul.f32 %v779, %v910
      %v918 = vmul.f32 %v697, %v910
      %v919 = vmul.f32 %v780, %v910
      %v920 = vmul.f32 %v700, %v910
      %v921 = vmul.f32 %v781, %v910
      %v922 = vmul.f32 %v703, %v910
      %v923 = vmul.f32 %v782, %v910
      %v924 = vmul.f32 %v706, %v910
      %v925 = vmul.f32 %v783, %v910
      %v926 = vmul.f32 %v709, %v910
      %v927 = vmul.f32 %v784, %v910
      %v928 = vmul.f32 %v712, %v910
      %v929 = vmul.f32 %v785, %v910
      %v930 = vmul.f32 %v715, %v910
      %v931 = vmul.f32 %v786, %v910
      %v932 = vmul.f32 %v718, %v910
      %v933 = vmul.f32 %v787, %v910
      %v934 = vmul.f32 %v721, %v910
      %v935 = vmul.f32 %v788, %v910
      %v936 = vmul.f32 %v724, %v910
      %v937 = vmul.f32 %v789, %v910
      %v938 = vmul.f32 %v727, %v910
      %v939 = vmul.f32 %v790, %v910
      %v940 = vmul.f32 %v730, %v910
      %v941 = vmul.f32 %v791, %v910
      %v942 = vmul.f32 %v733, %v910
      %v943 = vlaneseq
      %v944 = vshrl.u32 %v943, 7
      %v945 = vsub.s32 1, %v944
      %v946 = vrot.slane %v903, %v945
      %v947 = vmul.f32 %v640, %v946
      %v948 = vmul.f32 %v641, %v946
      %v949 = vmul.f32 %v603, %v946
      %v950 = vmul.f32 %v604, %v946
      %v951 = vmul.f32 %v605, %v946
      %v952 = vmul.f32 %v606, %v946
      %v953 = vmul.f32 %v607, %v946
      %v954 = vmul.f32 %v608, %v946
      %v955 = vmul.f32 %v609, %v946
      %v956 = vmul.f32 %v610, %v946
      %v957 = vmul.f32 %v611, %v946
      %v958 = vmul.f32 %v612, %v946
      %v959 = vmul.f32 %v613, %v946
      %v960 = vmul.f32 %v614, %v946
      %v961 = vmul.f32 %v615, %v946
      %v962 = vmul.f32 %v616, %v946
      %v963 = vmul.f32 %v617, %v946
      %v964 = vmul.f32 %v618, %v946
      %v965 = vmul.f32 %v619, %v946
      %v966 = vmul.f32 %v620, %v946
      %v967 = vmul.f32 %v621, %v946
      %v968 = vmul.f32 %v622, %v946
      %v969 = vmul.f32 %v623, %v946
      %v970 = vmul.f32 %v624, %v946
      %v971 = vmul.f32 %v625, %v946
      %v972 = vmul.f32 %v626, %v946
      %v973 = vmul.f32 %v627, %v946
      %v974 = vmul.f32 %v628, %v946
      %v975 = vmul.f32 %v629, %v946
      %v976 = vmul.f32 %v630, %v946
      %v977 = vmul.f32 %v631, %v946
      %v978 = vmul.f32 %v632, %v946
      %v979 = vadd.f32 %v911, %v947
      %v980 = vadd.f32 %v912, %v948
      %v981 = vadd.f32 %v913, %v949
      %v982 = vadd.f32 %v914, %v950
      %v983 = vadd.f32 %v915, %v951
      %v984 = vadd.f32 %v916, %v952
      %v985 = vadd.f32 %v917, %v953
      %v986 = vadd.f32 %v918, %v954
      %v987 = vadd.f32 %v919, %v955
      %v988 = vadd.f32 %v920, %v956
      %v989 = vadd.f32 %v921, %v957
      %v990 = vadd.f32 %v922, %v958
      %v991 = vadd.f32 %v923, %v959
      %v992 = vadd.f32 %v924, %v960
      %v993 = vadd.f32 %v925, %v961
      %v994 = vadd.f32 %v926, %v962
      %v995 = vadd.f32 %v927, %v963
      %v996 = vadd.f32 %v928, %v964
      %v997 = vadd.f32 %v929, %v965
      %v998 = vadd.f32 %v930, %v966
      %v999 = vadd.f32 %v931, %v967
      %v1000 = vadd.f32 %v932, %v968
      %v1001 = vadd.f32 %v933, %v969
      %v1002 = vadd.f32 %v934, %v970
      %v1003 = vadd.f32 %v935, %v971
      %v1004 = vadd.f32 %v936, %v972
      %v1005 = vadd.f32 %v937, %v973
      %v1006 = vadd.f32 %v938, %v974
      %v1007 = vadd.f32 %v939, %v975
      %v1008 = vadd.f32 %v940, %v976
      %v1009 = vadd.f32 %v941, %v977
      %v1010 = vadd.f32 %v942, %v978
      %v1011 = vlaneseq
      %v1012 = vshrl.u32 %v1011, 7
      %v1013 = vsub.s32 2, %v1012
      %v1014 = vrot.slane %v903, %v1013
      %v1015 = vmul.f32 %v777, %v1014
      %v1016 = vmul.f32 %v691, %v1014
      %v1017 = vmul.f32 %v778, %v1014
      %v1018 = vmul.f32 %v694, %v1014
      %v1019 = vmul.f32 %v779, %v1014
      %v1020 = vmul.f32 %v697, %v1014
      %v1021 = vmul.f32 %v780, %v1014
      %v1022 = vmul.f32 %v700, %v1014
      %v1023 = vmul.f32 %v781, %v1014
      %v1024 = vmul.f32 %v703, %v1014
      %v1025 = vmul.f32 %v782, %v1014
      %v1026 = vmul.f32 %v706, %v1014
      %v1027 = vmul.f32 %v783, %v1014
      %v1028 = vmul.f32 %v709, %v1014
      %v1029 = vmul.f32 %v784, %v1014
      %v1030 = vmul.f32 %v712, %v1014
      %v1031 = vmul.f32 %v785, %v1014
      %v1032 = vmul.f32 %v715, %v1014
      %v1033 = vmul.f32 %v786, %v1014
      %v1034 = vmul.f32 %v718, %v1014
      %v1035 = vmul.f32 %v787, %v1014
      %v1036 = vmul.f32 %v721, %v1014
      %v1037 = vmul.f32 %v788, %v1014
      %v1038 = vmul.f32 %v724, %v1014
      %v1039 = vmul.f32 %v789, %v1014
      %v1040 = vmul.f32 %v727, %v1014
      %v1041 = vmul.f32 %v790, %v1014
      %v1042 = vmul.f32 %v730, %v1014
      %v1043 = vmul.f32 %v791, %v1014
      %v1044 = vmul.f32 %v733, %v1014
      %v1045 = vmul.f32 %v792, %v1014
      %v1046 = vmul.f32 %v736, %v1014
      %v1047 = vadd.f32 %v979, %v1015
      %v1048 = vadd.f32 %v980, %v1016
      %v1049 = vadd.f32 %v981, %v1017
      %v1050 = vadd.f32 %v982, %v1018
      %v1051 = vadd.f32 %v983, %v1019
      %v1052 = vadd.f32 %v984, %v1020
      %v1053 = vadd.f32 %v985, %v1021
      %v1054 = vadd.f32 %v986, %v1022
      %v1055 = vadd.f32 %v987, %v1023
      %v1056 = vadd.f32 %v988, %v1024
      %v1057 = vadd.f32 %v989, %v1025
      %v1058 = vadd.f32 %v990, %v1026
      %v1059 = vadd.f32 %v991, %v1027
      %v1060 = vadd.f32 %v992, %v1028
      %v1061 = vadd.f32 %v993, %v1029
      %v1062 = vadd.f32 %v994, %v1030
      %v1063 = vadd.f32 %v995, %v1031
      %v1064 = vadd.f32 %v996, %v1032
      %v1065 = vadd.f32 %v997, %v1033
      %v1066 = vadd.f32 %v998, %v1034
      %v1067 = vadd.f32 %v999, %v1035
      %v1068 = vadd.f32 %v1000, %v1036
      %v1069 = vadd.f32 %v1001, %v1037
      %v1070 = vadd.f32 %v1002, %v1038
      %v1071 = vadd.f32 %v1003, %v1039
      %v1072 = vadd.f32 %v1004, %v1040
      %v1073 = vadd.f32 %v1005, %v1041
      %v1074 = vadd.f32 %v1006, %v1042
      %v1075 = vadd.f32 %v1007, %v1043
      %v1076 = vadd.f32 %v1008, %v1044
      %v1077 = vadd.f32 %v1009, %v1045
      %v1078 = vadd.f32 %v1010, %v1046
      %v1079 = vlaneseq
      %v1080 = vshrl.u32 %v1079, 7
      %v1081 = vsub.s32 3, %v1080
      %v1082 = vrot.slane %v903, %v1081
      %v1083 = vmul.f32 %v603, %v1082
      %v1084 = vmul.f32 %v604, %v1082
      %v1085 = vmul.f32 %v605, %v1082
      %v1086 = vmul.f32 %v606, %v1082
      %v1087 = vmul.f32 %v607, %v1082
      %v1088 = vmul.f32 %v608, %v1082
      %v1089 = vmul.f32 %v609, %v1082
      %v1090 = vmul.f32 %v610, %v1082
      %v1091 = vmul.f32 %v611, %v1082
      %v1092 = vmul.f32 %v612, %v1082
      %v1093 = vmul.f32 %v613, %v1082
      %v1094 = vmul.f32 %v614, %v1082
      %v1095 = vmul.f32 %v615, %v1082
      %v1096 = vmul.f32 %v616, %v1082
      %v1097 = vmul.f32 %v617, %v1082
      %v1098 = vmul.f32 %v618, %v1082
      %v1099 = vmul.f32 %v619, %v1082
      %v1100 = vmul.f32 %v620, %v1082
      %v1101 = vmul.f32 %v621, %v1082
      %v1102 = vmul.f32 %v622, %v1082
      %v1103 = vmul.f32 %v623, %v1082
      %v1104 = vmul.f32 %v624, %v1082
      %v1105 = vmul.f32 %v625, %v1082
      %v1106 = vmul.f32 %v626, %v1082
      %v1107 = vmul.f32 %v627, %v1082
      %v1108 = vmul.f32 %v628, %v1082
      %v1109 = vmul.f32 %v629, %v1082
      %v1110 = vmul.f32 %v630, %v1082
      %v1111 = vmul.f32 %v631, %v1082
      %v1112 = vmul.f32 %v632, %v1082
      %v1113 = vmul.f32 %v633, %v1082
      %v1114 = vmul.f32 %v634, %v1082
      %v1115 = vadd.f32 %v1047, %v1083
      %v1116 = vadd.f32 %v1048, %v1084
      %v1117 = vadd.f32 %v1049, %v1085
      %v1118 = vadd.f32 %v1050, %v1086
      %v1119 = vadd.f32 %v1051, %v1087
      %v1120 = vadd.f32 %v1052, %v1088
      %v1121 = vadd.f32 %v1053, %v1089
      %v1122 = vadd.f32 %v1054, %v1090
      %v1123 = vadd.f32 %v1055, %v1091
      %v1124 = vadd.f32 %v1056, %v1092
      %v1125 = vadd.f32 %v1057, %v1093
      %v1126 = vadd.f32 %v1058, %v1094
      %v1127 = vadd.f32 %v1059, %v1095
      %v1128 = vadd.f32 %v1060, %v1096
      %v1129 = vadd.f32 %v1061, %v1097
      %v1130 = vadd.f32 %v1062, %v1098
      %v1131 = vadd.f32 %v1063, %v1099
      %v1132 = vadd.f32 %v1064, %v1100
      %v1133 = vadd.f32 %v1065, %v1101
      %v1134 = vadd.f32 %v1066, %v1102
      %v1135 = vadd.f32 %v1067, %v1103
      %v1136 = vadd.f32 %v1068, %v1104
      %v1137 = vadd.f32 %v1069, %v1105
      %v1138 = vadd.f32 %v1070, %v1106
      %v1139 = vadd.f32 %v1071, %v1107
      %v1140 = vadd.f32 %v1072, %v1108
      %v1141 = vadd.f32 %v1073, %v1109
      %v1142 = vadd.f32 %v1074, %v1110
      %v1143 = vadd.f32 %v1075, %v1111
      %v1144 = vadd.f32 %v1076, %v1112
      %v1145 = vadd.f32 %v1077, %v1113
      %v1146 = vadd.f32 %v1078, %v1114
      %vm1147 = vcmask 31744
      %1148 = vst.msk [vmem:[%s427] sm:$0xff] %vm1147, %v1115
      %1149 = vst.msk [vmem:[%s427 + $0x8] sm:$0xff] %vm1147, %v1116
      %1150 = vst.msk [vmem:[%s427 + $0x10] sm:$0xff] %vm1147, %v1117
      %1151 = vst.msk [vmem:[%s427 + $0x18] sm:$0xff] %vm1147, %v1118
      %1152 = vst.msk [vmem:[%s427 + $0x20] sm:$0xff] %vm1147, %v1119
      %1153 = vst.msk [vmem:[%s427 + $0x28] sm:$0xff] %vm1147, %v1120
      %1154 = vst.msk [vmem:[%s427 + $0x30] sm:$0xff] %vm1147, %v1121
      %1155 = vst.msk [vmem:[%s427 + $0x38] sm:$0xff] %vm1147, %v1122
      %1156 = vst.msk [vmem:[%s427 + $0x40] sm:$0xff] %vm1147, %v1123
      %1157 = vst.msk [vmem:[%s427 + $0x48] sm:$0xff] %vm1147, %v1124
      %1158 = vst.msk [vmem:[%s427 + $0x50] sm:$0xff] %vm1147, %v1125
      %1159 = vst.msk [vmem:[%s427 + $0x58] sm:$0xff] %vm1147, %v1126
      %1160 = vst.msk [vmem:[%s427 + $0x60] sm:$0xff] %vm1147, %v1127
      %1161 = vst.msk [vmem:[%s427 + $0x68] sm:$0xff] %vm1147, %v1128
      %1162 = vst.msk [vmem:[%s427 + $0x70] sm:$0xff] %vm1147, %v1129
      %1163 = vst.msk [vmem:[%s427 + $0x78] sm:$0xff] %vm1147, %v1130
      %1164 = vst.msk [vmem:[%s427 + $0x80] sm:$0xff] %vm1147, %v1131
      %1165 = vst.msk [vmem:[%s427 + $0x88] sm:$0xff] %vm1147, %v1132
      %1166 = vst.msk [vmem:[%s427 + $0x90] sm:$0xff] %vm1147, %v1133
      %1167 = vst.msk [vmem:[%s427 + $0x98] sm:$0xff] %vm1147, %v1134
      %1168 = vst.msk [vmem:[%s427 + $0xa0] sm:$0xff] %vm1147, %v1135
      %1169 = vst.msk [vmem:[%s427 + $0xa8] sm:$0xff] %vm1147, %v1136
      %1170 = vst.msk [vmem:[%s427 + $0xb0] sm:$0xff] %vm1147, %v1137
      %1171 = vst.msk [vmem:[%s427 + $0xb8] sm:$0xff] %vm1147, %v1138
      %1172 = vst.msk [vmem:[%s427 + $0xc0] sm:$0xff] %vm1147, %v1139
      %1173 = vst.msk [vmem:[%s427 + $0xc8] sm:$0xff] %vm1147, %v1140
      %1174 = vst.msk [vmem:[%s427 + $0xd0] sm:$0xff] %vm1147, %v1141
      %1175 = vst.msk [vmem:[%s427 + $0xd8] sm:$0xff] %vm1147, %v1142
      %1176 = vst.msk [vmem:[%s427 + $0xe0] sm:$0xff] %vm1147, %v1143
      %1177 = vst.msk [vmem:[%s427 + $0xe8] sm:$0xff] %vm1147, %v1144
      %1178 = vst.msk [vmem:[%s427 + $0xf0] sm:$0xff] %vm1147, %v1145
      %1179 = vst.msk [vmem:[%s427 + $0xf8] sm:$0xff] %vm1147, %v1146
      %v1180 = vlaneseq
      %v1181 = vshrl.u32 %v1180, 7
      %v1182 = vsub.s32 0, %v1181
      %v1183 = vrot.slane %v904, %v1182
      %v1184 = vmul.f32 %v640, %v1183
      %v1185 = vmul.f32 %v641, %v1183
      %v1186 = vmul.f32 %v603, %v1183
      %v1187 = vmul.f32 %v604, %v1183
      %v1188 = vmul.f32 %v605, %v1183
      %v1189 = vmul.f32 %v606, %v1183
      %v1190 = vmul.f32 %v607, %v1183
      %v1191 = vmul.f32 %v608, %v1183
      %v1192 = vmul.f32 %v609, %v1183
      %v1193 = vmul.f32 %v610, %v1183
      %v1194 = vmul.f32 %v611, %v1183
      %v1195 = vmul.f32 %v612, %v1183
      %v1196 = vmul.f32 %v613, %v1183
      %v1197 = vmul.f32 %v614, %v1183
      %v1198 = vmul.f32 %v615, %v1183
      %v1199 = vmul.f32 %v616, %v1183
      %v1200 = vmul.f32 %v617, %v1183
      %v1201 = vmul.f32 %v618, %v1183
      %v1202 = vmul.f32 %v619, %v1183
      %v1203 = vmul.f32 %v620, %v1183
      %v1204 = vmul.f32 %v621, %v1183
      %v1205 = vmul.f32 %v622, %v1183
      %v1206 = vmul.f32 %v623, %v1183
      %v1207 = vmul.f32 %v624, %v1183
      %v1208 = vmul.f32 %v625, %v1183
      %v1209 = vmul.f32 %v626, %v1183
      %v1210 = vmul.f32 %v627, %v1183
      %v1211 = vmul.f32 %v628, %v1183
      %v1212 = vmul.f32 %v629, %v1183
      %v1213 = vmul.f32 %v630, %v1183
      %v1214 = vmul.f32 %v631, %v1183
      %v1215 = vmul.f32 %v632, %v1183
      %v1216 = vlaneseq
      %v1217 = vshrl.u32 %v1216, 7
      %v1218 = vsub.s32 1, %v1217
      %v1219 = vrot.slane %v904, %v1218
      %v1220 = vmul.f32 %v797, %v1219
      %v1221 = vmul.f32 %v885, %v1219
      %v1222 = vmul.f32 %v800, %v1219
      %v1223 = vmul.f32 %v886, %v1219
      %v1224 = vmul.f32 %v803, %v1219
      %v1225 = vmul.f32 %v887, %v1219
      %v1226 = vmul.f32 %v806, %v1219
      %v1227 = vmul.f32 %v888, %v1219
      %v1228 = vmul.f32 %v809, %v1219
      %v1229 = vmul.f32 %v889, %v1219
      %v1230 = vmul.f32 %v812, %v1219
      %v1231 = vmul.f32 %v890, %v1219
      %v1232 = vmul.f32 %v815, %v1219
      %v1233 = vmul.f32 %v891, %v1219
      %v1234 = vmul.f32 %v818, %v1219
      %v1235 = vmul.f32 %v892, %v1219
      %v1236 = vmul.f32 %v821, %v1219
      %v1237 = vmul.f32 %v893, %v1219
      %v1238 = vmul.f32 %v824, %v1219
      %v1239 = vmul.f32 %v894, %v1219
      %v1240 = vmul.f32 %v827, %v1219
      %v1241 = vmul.f32 %v895, %v1219
      %v1242 = vmul.f32 %v830, %v1219
      %v1243 = vmul.f32 %v896, %v1219
      %v1244 = vmul.f32 %v833, %v1219
      %v1245 = vmul.f32 %v897, %v1219
      %v1246 = vmul.f32 %v836, %v1219
      %v1247 = vmul.f32 %v898, %v1219
      %v1248 = vmul.f32 %v839, %v1219
      %v1249 = vmul.f32 %v899, %v1219
      %v1250 = vmul.f32 %v842, %v1219
      %v1251 = vmul.f32 %v900, %v1219
      %v1252 = vadd.f32 %v1184, %v1220
      %v1253 = vadd.f32 %v1185, %v1221
      %v1254 = vadd.f32 %v1186, %v1222
      %v1255 = vadd.f32 %v1187, %v1223
      %v1256 = vadd.f32 %v1188, %v1224
      %v1257 = vadd.f32 %v1189, %v1225
      %v1258 = vadd.f32 %v1190, %v1226
      %v1259 = vadd.f32 %v1191, %v1227
      %v1260 = vadd.f32 %v1192, %v1228
      %v1261 = vadd.f32 %v1193, %v1229
      %v1262 = vadd.f32 %v1194, %v1230
      %v1263 = vadd.f32 %v1195, %v1231
      %v1264 = vadd.f32 %v1196, %v1232
      %v1265 = vadd.f32 %v1197, %v1233
      %v1266 = vadd.f32 %v1198, %v1234
      %v1267 = vadd.f32 %v1199, %v1235
      %v1268 = vadd.f32 %v1200, %v1236
      %v1269 = vadd.f32 %v1201, %v1237
      %v1270 = vadd.f32 %v1202, %v1238
      %v1271 = vadd.f32 %v1203, %v1239
      %v1272 = vadd.f32 %v1204, %v1240
      %v1273 = vadd.f32 %v1205, %v1241
      %v1274 = vadd.f32 %v1206, %v1242
      %v1275 = vadd.f32 %v1207, %v1243
      %v1276 = vadd.f32 %v1208, %v1244
      %v1277 = vadd.f32 %v1209, %v1245
      %v1278 = vadd.f32 %v1210, %v1246
      %v1279 = vadd.f32 %v1211, %v1247
      %v1280 = vadd.f32 %v1212, %v1248
      %v1281 = vadd.f32 %v1213, %v1249
      %v1282 = vadd.f32 %v1214, %v1250
      %v1283 = vadd.f32 %v1215, %v1251
      %v1284 = vlaneseq
      %v1285 = vshrl.u32 %v1284, 7
      %v1286 = vsub.s32 2, %v1285
      %v1287 = vrot.slane %v904, %v1286
      %v1288 = vmul.f32 %v603, %v1287
      %v1289 = vmul.f32 %v604, %v1287
      %v1290 = vmul.f32 %v605, %v1287
      %v1291 = vmul.f32 %v606, %v1287
      %v1292 = vmul.f32 %v607, %v1287
      %v1293 = vmul.f32 %v608, %v1287
      %v1294 = vmul.f32 %v609, %v1287
      %v1295 = vmul.f32 %v610, %v1287
      %v1296 = vmul.f32 %v611, %v1287
      %v1297 = vmul.f32 %v612, %v1287
      %v1298 = vmul.f32 %v613, %v1287
      %v1299 = vmul.f32 %v614, %v1287
      %v1300 = vmul.f32 %v615, %v1287
      %v1301 = vmul.f32 %v616, %v1287
      %v1302 = vmul.f32 %v617, %v1287
      %v1303 = vmul.f32 %v618, %v1287
      %v1304 = vmul.f32 %v619, %v1287
      %v1305 = vmul.f32 %v620, %v1287
      %v1306 = vmul.f32 %v621, %v1287
      %v1307 = vmul.f32 %v622, %v1287
      %v1308 = vmul.f32 %v623, %v1287
      %v1309 = vmul.f32 %v624, %v1287
      %v1310 = vmul.f32 %v625, %v1287
      %v1311 = vmul.f32 %v626, %v1287
      %v1312 = vmul.f32 %v627, %v1287
      %v1313 = vmul.f32 %v628, %v1287
      %v1314 = vmul.f32 %v629, %v1287
      %v1315 = vmul.f32 %v630, %v1287
      %v1316 = vmul.f32 %v631, %v1287
      %v1317 = vmul.f32 %v632, %v1287
      %v1318 = vmul.f32 %v633, %v1287
      %v1319 = vmul.f32 %v634, %v1287
      %v1320 = vadd.f32 %v1252, %v1288
      %v1321 = vadd.f32 %v1253, %v1289
      %v1322 = vadd.f32 %v1254, %v1290
      %v1323 = vadd.f32 %v1255, %v1291
      %v1324 = vadd.f32 %v1256, %v1292
      %v1325 = vadd.f32 %v1257, %v1293
      %v1326 = vadd.f32 %v1258, %v1294
      %v1327 = vadd.f32 %v1259, %v1295
      %v1328 = vadd.f32 %v1260, %v1296
      %v1329 = vadd.f32 %v1261, %v1297
      %v1330 = vadd.f32 %v1262, %v1298
      %v1331 = vadd.f32 %v1263, %v1299
      %v1332 = vadd.f32 %v1264, %v1300
      %v1333 = vadd.f32 %v1265, %v1301
      %v1334 = vadd.f32 %v1266, %v1302
      %v1335 = vadd.f32 %v1267, %v1303
      %v1336 = vadd.f32 %v1268, %v1304
      %v1337 = vadd.f32 %v1269, %v1305
      %v1338 = vadd.f32 %v1270, %v1306
      %v1339 = vadd.f32 %v1271, %v1307
      %v1340 = vadd.f32 %v1272, %v1308
      %v1341 = vadd.f32 %v1273, %v1309
      %v1342 = vadd.f32 %v1274, %v1310
      %v1343 = vadd.f32 %v1275, %v1311
      %v1344 = vadd.f32 %v1276, %v1312
      %v1345 = vadd.f32 %v1277, %v1313
      %v1346 = vadd.f32 %v1278, %v1314
      %v1347 = vadd.f32 %v1279, %v1315
      %v1348 = vadd.f32 %v1280, %v1316
      %v1349 = vadd.f32 %v1281, %v1317
      %v1350 = vadd.f32 %v1282, %v1318
      %v1351 = vadd.f32 %v1283, %v1319
      %v1352 = vlaneseq
      %v1353 = vshrl.u32 %v1352, 7
      %v1354 = vsub.s32 3, %v1353
      %v1355 = vrot.slane %v904, %v1354
      %v1356 = vmul.f32 %v800, %v1355
      %v1357 = vmul.f32 %v886, %v1355
      %v1358 = vmul.f32 %v803, %v1355
      %v1359 = vmul.f32 %v887, %v1355
      %v1360 = vmul.f32 %v806, %v1355
      %v1361 = vmul.f32 %v888, %v1355
      %v1362 = vmul.f32 %v809, %v1355
      %v1363 = vmul.f32 %v889, %v1355
      %v1364 = vmul.f32 %v812, %v1355
      %v1365 = vmul.f32 %v890, %v1355
      %v1366 = vmul.f32 %v815, %v1355
      %v1367 = vmul.f32 %v891, %v1355
      %v1368 = vmul.f32 %v818, %v1355
      %v1369 = vmul.f32 %v892, %v1355
      %v1370 = vmul.f32 %v821, %v1355
      %v1371 = vmul.f32 %v893, %v1355
      %v1372 = vmul.f32 %v824, %v1355
      %v1373 = vmul.f32 %v894, %v1355
      %v1374 = vmul.f32 %v827, %v1355
      %v1375 = vmul.f32 %v895, %v1355
      %v1376 = vmul.f32 %v830, %v1355
      %v1377 = vmul.f32 %v896, %v1355
      %v1378 = vmul.f32 %v833, %v1355
      %v1379 = vmul.f32 %v897, %v1355
      %v1380 = vmul.f32 %v836, %v1355
      %v1381 = vmul.f32 %v898, %v1355
      %v1382 = vmul.f32 %v839, %v1355
      %v1383 = vmul.f32 %v899, %v1355
      %v1384 = vmul.f32 %v842, %v1355
      %v1385 = vmul.f32 %v900, %v1355
      %v1386 = vmul.f32 %v845, %v1355
      %v1387 = vmul.f32 %v901, %v1355
      %v1388 = vadd.f32 %v1320, %v1356
      %v1389 = vadd.f32 %v1321, %v1357
      %v1390 = vadd.f32 %v1322, %v1358
      %v1391 = vadd.f32 %v1323, %v1359
      %v1392 = vadd.f32 %v1324, %v1360
      %v1393 = vadd.f32 %v1325, %v1361
      %v1394 = vadd.f32 %v1326, %v1362
      %v1395 = vadd.f32 %v1327, %v1363
      %v1396 = vadd.f32 %v1328, %v1364
      %v1397 = vadd.f32 %v1329, %v1365
      %v1398 = vadd.f32 %v1330, %v1366
      %v1399 = vadd.f32 %v1331, %v1367
      %v1400 = vadd.f32 %v1332, %v1368
      %v1401 = vadd.f32 %v1333, %v1369
      %v1402 = vadd.f32 %v1334, %v1370
      %v1403 = vadd.f32 %v1335, %v1371
      %v1404 = vadd.f32 %v1336, %v1372
      %v1405 = vadd.f32 %v1337, %v1373
      %v1406 = vadd.f32 %v1338, %v1374
      %v1407 = vadd.f32 %v1339, %v1375
      %v1408 = vadd.f32 %v1340, %v1376
      %v1409 = vadd.f32 %v1341, %v1377
      %v1410 = vadd.f32 %v1342, %v1378
      %v1411 = vadd.f32 %v1343, %v1379
      %v1412 = vadd.f32 %v1344, %v1380
      %v1413 = vadd.f32 %v1345, %v1381
      %v1414 = vadd.f32 %v1346, %v1382
      %v1415 = vadd.f32 %v1347, %v1383
      %v1416 = vadd.f32 %v1348, %v1384
      %v1417 = vadd.f32 %v1349, %v1385
      %v1418 = vadd.f32 %v1350, %v1386
      %v1419 = vadd.f32 %v1351, %v1387
      %s1420 = scalar_lea.vmem %s427, 256
      %1421 = vst.msk [vmem:[%s1420] sm:$0xff] %vm1147, %v1388
      %1422 = vst.msk [vmem:[%s1420 + $0x8] sm:$0xff] %vm1147, %v1389
      %1423 = vst.msk [vmem:[%s1420 + $0x10] sm:$0xff] %vm1147, %v1390
      %1424 = vst.msk [vmem:[%s1420 + $0x18] sm:$0xff] %vm1147, %v1391
      %1425 = vst.msk [vmem:[%s1420 + $0x20] sm:$0xff] %vm1147, %v1392
      %1426 = vst.msk [vmem:[%s1420 + $0x28] sm:$0xff] %vm1147, %v1393
      %1427 = vst.msk [vmem:[%s1420 + $0x30] sm:$0xff] %vm1147, %v1394
      %1428 = vst.msk [vmem:[%s1420 + $0x38] sm:$0xff] %vm1147, %v1395
      %1429 = vst.msk [vmem:[%s1420 + $0x40] sm:$0xff] %vm1147, %v1396
      %1430 = vst.msk [vmem:[%s1420 + $0x48] sm:$0xff] %vm1147, %v1397
      %1431 = vst.msk [vmem:[%s1420 + $0x50] sm:$0xff] %vm1147, %v1398
      %1432 = vst.msk [vmem:[%s1420 + $0x58] sm:$0xff] %vm1147, %v1399
      %1433 = vst.msk [vmem:[%s1420 + $0x60] sm:$0xff] %vm1147, %v1400
      %1434 = vst.msk [vmem:[%s1420 + $0x68] sm:$0xff] %vm1147, %v1401
      %1435 = vst.msk [vmem:[%s1420 + $0x70] sm:$0xff] %vm1147, %v1402
      %1436 = vst.msk [vmem:[%s1420 + $0x78] sm:$0xff] %vm1147, %v1403
      %1437 = vst.msk [vmem:[%s1420 + $0x80] sm:$0xff] %vm1147, %v1404
      %1438 = vst.msk [vmem:[%s1420 + $0x88] sm:$0xff] %vm1147, %v1405
      %1439 = vst.msk [vmem:[%s1420 + $0x90] sm:$0xff] %vm1147, %v1406
      %1440 = vst.msk [vmem:[%s1420 + $0x98] sm:$0xff] %vm1147, %v1407
      %1441 = vst.msk [vmem:[%s1420 + $0xa0] sm:$0xff] %vm1147, %v1408
      %1442 = vst.msk [vmem:[%s1420 + $0xa8] sm:$0xff] %vm1147, %v1409
      %1443 = vst.msk [vmem:[%s1420 + $0xb0] sm:$0xff] %vm1147, %v1410
      %1444 = vst.msk [vmem:[%s1420 + $0xb8] sm:$0xff] %vm1147, %v1411
      %1445 = vst.msk [vmem:[%s1420 + $0xc0] sm:$0xff] %vm1147, %v1412
      %1446 = vst.msk [vmem:[%s1420 + $0xc8] sm:$0xff] %vm1147, %v1413
      %1447 = vst.msk [vmem:[%s1420 + $0xd0] sm:$0xff] %vm1147, %v1414
      %1448 = vst.msk [vmem:[%s1420 + $0xd8] sm:$0xff] %vm1147, %v1415
      %1449 = vst.msk [vmem:[%s1420 + $0xe0] sm:$0xff] %vm1147, %v1416
      %1450 = vst.msk [vmem:[%s1420 + $0xe8] sm:$0xff] %vm1147, %v1417
      %1451 = vst.msk [vmem:[%s1420 + $0xf0] sm:$0xff] %vm1147, %v1418
      %1452 = vst.msk [vmem:[%s1420 + $0xf8] sm:$0xff] %vm1147, %v1419
      %v1453 = vlaneseq
      %v1454 = vshrl.u32 %v1453, 7
      %v1455 = vsub.s32 0, %v1454
      %v1456 = vrot.slane %v905, %v1455
      %v1457 = vmul.f32 %v777, %v1456
      %v1458 = vmul.f32 %v691, %v1456
      %v1459 = vmul.f32 %v778, %v1456
      %v1460 = vmul.f32 %v694, %v1456
      %v1461 = vmul.f32 %v779, %v1456
      %v1462 = vmul.f32 %v697, %v1456
      %v1463 = vmul.f32 %v780, %v1456
      %v1464 = vmul.f32 %v700, %v1456
      %v1465 = vmul.f32 %v781, %v1456
      %v1466 = vmul.f32 %v703, %v1456
      %v1467 = vmul.f32 %v782, %v1456
      %v1468 = vmul.f32 %v706, %v1456
      %v1469 = vmul.f32 %v783, %v1456
      %v1470 = vmul.f32 %v709, %v1456
      %v1471 = vmul.f32 %v784, %v1456
      %v1472 = vmul.f32 %v712, %v1456
      %v1473 = vmul.f32 %v785, %v1456
      %v1474 = vmul.f32 %v715, %v1456
      %v1475 = vmul.f32 %v786, %v1456
      %v1476 = vmul.f32 %v718, %v1456
      %v1477 = vmul.f32 %v787, %v1456
      %v1478 = vmul.f32 %v721, %v1456
      %v1479 = vmul.f32 %v788, %v1456
      %v1480 = vmul.f32 %v724, %v1456
      %v1481 = vmul.f32 %v789, %v1456
      %v1482 = vmul.f32 %v727, %v1456
      %v1483 = vmul.f32 %v790, %v1456
      %v1484 = vmul.f32 %v730, %v1456
      %v1485 = vmul.f32 %v791, %v1456
      %v1486 = vmul.f32 %v733, %v1456
      %v1487 = vmul.f32 %v792, %v1456
      %v1488 = vmul.f32 %v736, %v1456
      %v1489 = vlaneseq
      %v1490 = vshrl.u32 %v1489, 7
      %v1491 = vsub.s32 1, %v1490
      %v1492 = vrot.slane %v905, %v1491
      %v1493 = vmul.f32 %v603, %v1492
      %v1494 = vmul.f32 %v604, %v1492
      %v1495 = vmul.f32 %v605, %v1492
      %v1496 = vmul.f32 %v606, %v1492
      %v1497 = vmul.f32 %v607, %v1492
      %v1498 = vmul.f32 %v608, %v1492
      %v1499 = vmul.f32 %v609, %v1492
      %v1500 = vmul.f32 %v610, %v1492
      %v1501 = vmul.f32 %v611, %v1492
      %v1502 = vmul.f32 %v612, %v1492
      %v1503 = vmul.f32 %v613, %v1492
      %v1504 = vmul.f32 %v614, %v1492
      %v1505 = vmul.f32 %v615, %v1492
      %v1506 = vmul.f32 %v616, %v1492
      %v1507 = vmul.f32 %v617, %v1492
      %v1508 = vmul.f32 %v618, %v1492
      %v1509 = vmul.f32 %v619, %v1492
      %v1510 = vmul.f32 %v620, %v1492
      %v1511 = vmul.f32 %v621, %v1492
      %v1512 = vmul.f32 %v622, %v1492
      %v1513 = vmul.f32 %v623, %v1492
      %v1514 = vmul.f32 %v624, %v1492
      %v1515 = vmul.f32 %v625, %v1492
      %v1516 = vmul.f32 %v626, %v1492
      %v1517 = vmul.f32 %v627, %v1492
      %v1518 = vmul.f32 %v628, %v1492
      %v1519 = vmul.f32 %v629, %v1492
      %v1520 = vmul.f32 %v630, %v1492
      %v1521 = vmul.f32 %v631, %v1492
      %v1522 = vmul.f32 %v632, %v1492
      %v1523 = vmul.f32 %v633, %v1492
      %v1524 = vmul.f32 %v634, %v1492
      %v1525 = vadd.f32 %v1457, %v1493
      %v1526 = vadd.f32 %v1458, %v1494
      %v1527 = vadd.f32 %v1459, %v1495
      %v1528 = vadd.f32 %v1460, %v1496
      %v1529 = vadd.f32 %v1461, %v1497
      %v1530 = vadd.f32 %v1462, %v1498
      %v1531 = vadd.f32 %v1463, %v1499
      %v1532 = vadd.f32 %v1464, %v1500
      %v1533 = vadd.f32 %v1465, %v1501
      %v1534 = vadd.f32 %v1466, %v1502
      %v1535 = vadd.f32 %v1467, %v1503
      %v1536 = vadd.f32 %v1468, %v1504
      %v1537 = vadd.f32 %v1469, %v1505
      %v1538 = vadd.f32 %v1470, %v1506
      %v1539 = vadd.f32 %v1471, %v1507
      %v1540 = vadd.f32 %v1472, %v1508
      %v1541 = vadd.f32 %v1473, %v1509
      %v1542 = vadd.f32 %v1474, %v1510
      %v1543 = vadd.f32 %v1475, %v1511
      %v1544 = vadd.f32 %v1476, %v1512
      %v1545 = vadd.f32 %v1477, %v1513
      %v1546 = vadd.f32 %v1478, %v1514
      %v1547 = vadd.f32 %v1479, %v1515
      %v1548 = vadd.f32 %v1480, %v1516
      %v1549 = vadd.f32 %v1481, %v1517
      %v1550 = vadd.f32 %v1482, %v1518
      %v1551 = vadd.f32 %v1483, %v1519
      %v1552 = vadd.f32 %v1484, %v1520
      %v1553 = vadd.f32 %v1485, %v1521
      %v1554 = vadd.f32 %v1486, %v1522
      %v1555 = vadd.f32 %v1487, %v1523
      %v1556 = vadd.f32 %v1488, %v1524
      %v1557 = vlaneseq
      %v1558 = vshrl.u32 %v1557, 7
      %v1559 = vsub.s32 2, %v1558
      %v1560 = vrot.slane %v905, %v1559
      %v1561 = vmul.f32 %v778, %v1560
      %v1562 = vmul.f32 %v694, %v1560
      %v1563 = vmul.f32 %v779, %v1560
      %v1564 = vmul.f32 %v697, %v1560
      %v1565 = vmul.f32 %v780, %v1560
      %v1566 = vmul.f32 %v700, %v1560
      %v1567 = vmul.f32 %v781, %v1560
      %v1568 = vmul.f32 %v703, %v1560
      %v1569 = vmul.f32 %v782, %v1560
      %v1570 = vmul.f32 %v706, %v1560
      %v1571 = vmul.f32 %v783, %v1560
      %v1572 = vmul.f32 %v709, %v1560
      %v1573 = vmul.f32 %v784, %v1560
      %v1574 = vmul.f32 %v712, %v1560
      %v1575 = vmul.f32 %v785, %v1560
      %v1576 = vmul.f32 %v715, %v1560
      %v1577 = vmul.f32 %v786, %v1560
      %v1578 = vmul.f32 %v718, %v1560
      %v1579 = vmul.f32 %v787, %v1560
      %v1580 = vmul.f32 %v721, %v1560
      %v1581 = vmul.f32 %v788, %v1560
      %v1582 = vmul.f32 %v724, %v1560
      %v1583 = vmul.f32 %v789, %v1560
      %v1584 = vmul.f32 %v727, %v1560
      %v1585 = vmul.f32 %v790, %v1560
      %v1586 = vmul.f32 %v730, %v1560
      %v1587 = vmul.f32 %v791, %v1560
      %v1588 = vmul.f32 %v733, %v1560
      %v1589 = vmul.f32 %v792, %v1560
      %v1590 = vmul.f32 %v736, %v1560
      %v1591 = vmul.f32 %v793, %v1560
      %v1592 = vmul.f32 %v739, %v1560
      %v1593 = vadd.f32 %v1525, %v1561
      %v1594 = vadd.f32 %v1526, %v1562
      %v1595 = vadd.f32 %v1527, %v1563
      %v1596 = vadd.f32 %v1528, %v1564
      %v1597 = vadd.f32 %v1529, %v1565
      %v1598 = vadd.f32 %v1530, %v1566
      %v1599 = vadd.f32 %v1531, %v1567
      %v1600 = vadd.f32 %v1532, %v1568
      %v1601 = vadd.f32 %v1533, %v1569
      %v1602 = vadd.f32 %v1534, %v1570
      %v1603 = vadd.f32 %v1535, %v1571
      %v1604 = vadd.f32 %v1536, %v1572
      %v1605 = vadd.f32 %v1537, %v1573
      %v1606 = vadd.f32 %v1538, %v1574
      %v1607 = vadd.f32 %v1539, %v1575
      %v1608 = vadd.f32 %v1540, %v1576
      %v1609 = vadd.f32 %v1541, %v1577
      %v1610 = vadd.f32 %v1542, %v1578
      %v1611 = vadd.f32 %v1543, %v1579
      %v1612 = vadd.f32 %v1544, %v1580
      %v1613 = vadd.f32 %v1545, %v1581
      %v1614 = vadd.f32 %v1546, %v1582
      %v1615 = vadd.f32 %v1547, %v1583
      %v1616 = vadd.f32 %v1548, %v1584
      %v1617 = vadd.f32 %v1549, %v1585
      %v1618 = vadd.f32 %v1550, %v1586
      %v1619 = vadd.f32 %v1551, %v1587
      %v1620 = vadd.f32 %v1552, %v1588
      %v1621 = vadd.f32 %v1553, %v1589
      %v1622 = vadd.f32 %v1554, %v1590
      %v1623 = vadd.f32 %v1555, %v1591
      %v1624 = vadd.f32 %v1556, %v1592
      %v1625 = vlaneseq
      %v1626 = vshrl.u32 %v1625, 7
      %v1627 = vsub.s32 3, %v1626
      %v1628 = vrot.slane %v905, %v1627
      %v1629 = vmul.f32 %v605, %v1628
      %v1630 = vmul.f32 %v606, %v1628
      %v1631 = vmul.f32 %v607, %v1628
      %v1632 = vmul.f32 %v608, %v1628
      %v1633 = vmul.f32 %v609, %v1628
      %v1634 = vmul.f32 %v610, %v1628
      %v1635 = vmul.f32 %v611, %v1628
      %v1636 = vmul.f32 %v612, %v1628
      %v1637 = vmul.f32 %v613, %v1628
      %v1638 = vmul.f32 %v614, %v1628
      %v1639 = vmul.f32 %v615, %v1628
      %v1640 = vmul.f32 %v616, %v1628
      %v1641 = vmul.f32 %v617, %v1628
      %v1642 = vmul.f32 %v618, %v1628
      %v1643 = vmul.f32 %v619, %v1628
      %v1644 = vmul.f32 %v620, %v1628
      %v1645 = vmul.f32 %v621, %v1628
      %v1646 = vmul.f32 %v622, %v1628
      %v1647 = vmul.f32 %v623, %v1628
      %v1648 = vmul.f32 %v624, %v1628
      %v1649 = vmul.f32 %v625, %v1628
      %v1650 = vmul.f32 %v626, %v1628
      %v1651 = vmul.f32 %v627, %v1628
      %v1652 = vmul.f32 %v628, %v1628
      %v1653 = vmul.f32 %v629, %v1628
      %v1654 = vmul.f32 %v630, %v1628
      %v1655 = vmul.f32 %v631, %v1628
      %v1656 = vmul.f32 %v632, %v1628
      %v1657 = vmul.f32 %v633, %v1628
      %v1658 = vmul.f32 %v634, %v1628
      %v1659 = vmul.f32 %v647, %v1628
      %v1660 = vmul.f32 %v648, %v1628
      %v1661 = vadd.f32 %v1593, %v1629
      %v1662 = vadd.f32 %v1594, %v1630
      %v1663 = vadd.f32 %v1595, %v1631
      %v1664 = vadd.f32 %v1596, %v1632
      %v1665 = vadd.f32 %v1597, %v1633
      %v1666 = vadd.f32 %v1598, %v1634
      %v1667 = vadd.f32 %v1599, %v1635
      %v1668 = vadd.f32 %v1600, %v1636
      %v1669 = vadd.f32 %v1601, %v1637
      %v1670 = vadd.f32 %v1602, %v1638
      %v1671 = vadd.f32 %v1603, %v1639
      %v1672 = vadd.f32 %v1604, %v1640
      %v1673 = vadd.f32 %v1605, %v1641
      %v1674 = vadd.f32 %v1606, %v1642
      %v1675 = vadd.f32 %v1607, %v1643
      %v1676 = vadd.f32 %v1608, %v1644
      %v1677 = vadd.f32 %v1609, %v1645
      %v1678 = vadd.f32 %v1610, %v1646
      %v1679 = vadd.f32 %v1611, %v1647
      %v1680 = vadd.f32 %v1612, %v1648
      %v1681 = vadd.f32 %v1613, %v1649
      %v1682 = vadd.f32 %v1614, %v1650
      %v1683 = vadd.f32 %v1615, %v1651
      %v1684 = vadd.f32 %v1616, %v1652
      %v1685 = vadd.f32 %v1617, %v1653
      %v1686 = vadd.f32 %v1618, %v1654
      %v1687 = vadd.f32 %v1619, %v1655
      %v1688 = vadd.f32 %v1620, %v1656
      %v1689 = vadd.f32 %v1621, %v1657
      %v1690 = vadd.f32 %v1622, %v1658
      %v1691 = vadd.f32 %v1623, %v1659
      %v1692 = vadd.f32 %v1624, %v1660
      %s1693 = scalar_lea.vmem %s427, 512
      %1694 = vst.msk [vmem:[%s1693] sm:$0xff] %vm1147, %v1661
      %1695 = vst.msk [vmem:[%s1693 + $0x8] sm:$0xff] %vm1147, %v1662
      %1696 = vst.msk [vmem:[%s1693 + $0x10] sm:$0xff] %vm1147, %v1663
      %1697 = vst.msk [vmem:[%s1693 + $0x18] sm:$0xff] %vm1147, %v1664
      %1698 = vst.msk [vmem:[%s1693 + $0x20] sm:$0xff] %vm1147, %v1665
      %1699 = vst.msk [vmem:[%s1693 + $0x28] sm:$0xff] %vm1147, %v1666
      %1700 = vst.msk [vmem:[%s1693 + $0x30] sm:$0xff] %vm1147, %v1667
      %1701 = vst.msk [vmem:[%s1693 + $0x38] sm:$0xff] %vm1147, %v1668
      %1702 = vst.msk [vmem:[%s1693 + $0x40] sm:$0xff] %vm1147, %v1669
      %1703 = vst.msk [vmem:[%s1693 + $0x48] sm:$0xff] %vm1147, %v1670
      %1704 = vst.msk [vmem:[%s1693 + $0x50] sm:$0xff] %vm1147, %v1671
      %1705 = vst.msk [vmem:[%s1693 + $0x58] sm:$0xff] %vm1147, %v1672
      %1706 = vst.msk [vmem:[%s1693 + $0x60] sm:$0xff] %vm1147, %v1673
      %1707 = vst.msk [vmem:[%s1693 + $0x68] sm:$0xff] %vm1147, %v1674
      %1708 = vst.msk [vmem:[%s1693 + $0x70] sm:$0xff] %vm1147, %v1675
      %1709 = vst.msk [vmem:[%s1693 + $0x78] sm:$0xff] %vm1147, %v1676
      %1710 = vst.msk [vmem:[%s1693 + $0x80] sm:$0xff] %vm1147, %v1677
      %1711 = vst.msk [vmem:[%s1693 + $0x88] sm:$0xff] %vm1147, %v1678
      %1712 = vst.msk [vmem:[%s1693 + $0x90] sm:$0xff] %vm1147, %v1679
      %1713 = vst.msk [vmem:[%s1693 + $0x98] sm:$0xff] %vm1147, %v1680
      %1714 = vst.msk [vmem:[%s1693 + $0xa0] sm:$0xff] %vm1147, %v1681
      %1715 = vst.msk [vmem:[%s1693 + $0xa8] sm:$0xff] %vm1147, %v1682
      %1716 = vst.msk [vmem:[%s1693 + $0xb0] sm:$0xff] %vm1147, %v1683
      %1717 = vst.msk [vmem:[%s1693 + $0xb8] sm:$0xff] %vm1147, %v1684
      %1718 = vst.msk [vmem:[%s1693 + $0xc0] sm:$0xff] %vm1147, %v1685
      %1719 = vst.msk [vmem:[%s1693 + $0xc8] sm:$0xff] %vm1147, %v1686
      %1720 = vst.msk [vmem:[%s1693 + $0xd0] sm:$0xff] %vm1147, %v1687
      %1721 = vst.msk [vmem:[%s1693 + $0xd8] sm:$0xff] %vm1147, %v1688
      %1722 = vst.msk [vmem:[%s1693 + $0xe0] sm:$0xff] %vm1147, %v1689
      %1723 = vst.msk [vmem:[%s1693 + $0xe8] sm:$0xff] %vm1147, %v1690
      %1724 = vst.msk [vmem:[%s1693 + $0xf0] sm:$0xff] %vm1147, %v1691
      %1725 = vst.msk [vmem:[%s1693 + $0xf8] sm:$0xff] %vm1147, %v1692
      %v1726 = vlaneseq
      %v1727 = vshrl.u32 %v1726, 7
      %v1728 = vsub.s32 0, %v1727
      %v1729 = vrot.slane %v906, %v1728
      %v1730 = vmul.f32 %v603, %v1729
      %v1731 = vmul.f32 %v604, %v1729
      %v1732 = vmul.f32 %v605, %v1729
      %v1733 = vmul.f32 %v606, %v1729
      %v1734 = vmul.f32 %v607, %v1729
      %v1735 = vmul.f32 %v608, %v1729
      %v1736 = vmul.f32 %v609, %v1729
      %v1737 = vmul.f32 %v610, %v1729
      %v1738 = vmul.f32 %v611, %v1729
      %v1739 = vmul.f32 %v612, %v1729
      %v1740 = vmul.f32 %v613, %v1729
      %v1741 = vmul.f32 %v614, %v1729
      %v1742 = vmul.f32 %v615, %v1729
      %v1743 = vmul.f32 %v616, %v1729
      %v1744 = vmul.f32 %v617, %v1729
      %v1745 = vmul.f32 %v618, %v1729
      %v1746 = vmul.f32 %v619, %v1729
      %v1747 = vmul.f32 %v620, %v1729
      %v1748 = vmul.f32 %v621, %v1729
      %v1749 = vmul.f32 %v622, %v1729
      %v1750 = vmul.f32 %v623, %v1729
      %v1751 = vmul.f32 %v624, %v1729
      %v1752 = vmul.f32 %v625, %v1729
      %v1753 = vmul.f32 %v626, %v1729
      %v1754 = vmul.f32 %v627, %v1729
      %v1755 = vmul.f32 %v628, %v1729
      %v1756 = vmul.f32 %v629, %v1729
      %v1757 = vmul.f32 %v630, %v1729
      %v1758 = vmul.f32 %v631, %v1729
      %v1759 = vmul.f32 %v632, %v1729
      %v1760 = vmul.f32 %v633, %v1729
      %v1761 = vmul.f32 %v634, %v1729
      %v1762 = vlaneseq
      %v1763 = vshrl.u32 %v1762, 7
      %v1764 = vsub.s32 1, %v1763
      %v1765 = vrot.slane %v906, %v1764
      %v1766 = vmul.f32 %v800, %v1765
      %v1767 = vmul.f32 %v886, %v1765
      %v1768 = vmul.f32 %v803, %v1765
      %v1769 = vmul.f32 %v887, %v1765
      %v1770 = vmul.f32 %v806, %v1765
      %v1771 = vmul.f32 %v888, %v1765
      %v1772 = vmul.f32 %v809, %v1765
      %v1773 = vmul.f32 %v889, %v1765
      %v1774 = vmul.f32 %v812, %v1765
      %v1775 = vmul.f32 %v890, %v1765
      %v1776 = vmul.f32 %v815, %v1765
      %v1777 = vmul.f32 %v891, %v1765
      %v1778 = vmul.f32 %v818, %v1765
      %v1779 = vmul.f32 %v892, %v1765
      %v1780 = vmul.f32 %v821, %v1765
      %v1781 = vmul.f32 %v893, %v1765
      %v1782 = vmul.f32 %v824, %v1765
      %v1783 = vmul.f32 %v894, %v1765
      %v1784 = vmul.f32 %v827, %v1765
      %v1785 = vmul.f32 %v895, %v1765
      %v1786 = vmul.f32 %v830, %v1765
      %v1787 = vmul.f32 %v896, %v1765
      %v1788 = vmul.f32 %v833, %v1765
      %v1789 = vmul.f32 %v897, %v1765
      %v1790 = vmul.f32 %v836, %v1765
      %v1791 = vmul.f32 %v898, %v1765
      %v1792 = vmul.f32 %v839, %v1765
      %v1793 = vmul.f32 %v899, %v1765
      %v1794 = vmul.f32 %v842, %v1765
      %v1795 = vmul.f32 %v900, %v1765
      %v1796 = vmul.f32 %v845, %v1765
      %v1797 = vmul.f32 %v901, %v1765
      %v1798 = vadd.f32 %v1730, %v1766
      %v1799 = vadd.f32 %v1731, %v1767
      %v1800 = vadd.f32 %v1732, %v1768
      %v1801 = vadd.f32 %v1733, %v1769
      %v1802 = vadd.f32 %v1734, %v1770
      %v1803 = vadd.f32 %v1735, %v1771
      %v1804 = vadd.f32 %v1736, %v1772
      %v1805 = vadd.f32 %v1737, %v1773
      %v1806 = vadd.f32 %v1738, %v1774
      %v1807 = vadd.f32 %v1739, %v1775
      %v1808 = vadd.f32 %v1740, %v1776
      %v1809 = vadd.f32 %v1741, %v1777
      %v1810 = vadd.f32 %v1742, %v1778
      %v1811 = vadd.f32 %v1743, %v1779
      %v1812 = vadd.f32 %v1744, %v1780
      %v1813 = vadd.f32 %v1745, %v1781
      %v1814 = vadd.f32 %v1746, %v1782
      %v1815 = vadd.f32 %v1747, %v1783
      %v1816 = vadd.f32 %v1748, %v1784
      %v1817 = vadd.f32 %v1749, %v1785
      %v1818 = vadd.f32 %v1750, %v1786
      %v1819 = vadd.f32 %v1751, %v1787
      %v1820 = vadd.f32 %v1752, %v1788
      %v1821 = vadd.f32 %v1753, %v1789
      %v1822 = vadd.f32 %v1754, %v1790
      %v1823 = vadd.f32 %v1755, %v1791
      %v1824 = vadd.f32 %v1756, %v1792
      %v1825 = vadd.f32 %v1757, %v1793
      %v1826 = vadd.f32 %v1758, %v1794
      %v1827 = vadd.f32 %v1759, %v1795
      %v1828 = vadd.f32 %v1760, %v1796
      %v1829 = vadd.f32 %v1761, %v1797
      %v1830 = vlaneseq
      %v1831 = vshrl.u32 %v1830, 7
      %v1832 = vsub.s32 2, %v1831
      %v1833 = vrot.slane %v906, %v1832
      %v1834 = vmul.f32 %v605, %v1833
      %v1835 = vmul.f32 %v606, %v1833
      %v1836 = vmul.f32 %v607, %v1833
      %v1837 = vmul.f32 %v608, %v1833
      %v1838 = vmul.f32 %v609, %v1833
      %v1839 = vmul.f32 %v610, %v1833
      %v1840 = vmul.f32 %v611, %v1833
      %v1841 = vmul.f32 %v612, %v1833
      %v1842 = vmul.f32 %v613, %v1833
      %v1843 = vmul.f32 %v614, %v1833
      %v1844 = vmul.f32 %v615, %v1833
      %v1845 = vmul.f32 %v616, %v1833
      %v1846 = vmul.f32 %v617, %v1833
      %v1847 = vmul.f32 %v618, %v1833
      %v1848 = vmul.f32 %v619, %v1833
      %v1849 = vmul.f32 %v620, %v1833
      %v1850 = vmul.f32 %v621, %v1833
      %v1851 = vmul.f32 %v622, %v1833
      %v1852 = vmul.f32 %v623, %v1833
      %v1853 = vmul.f32 %v624, %v1833
      %v1854 = vmul.f32 %v625, %v1833
      %v1855 = vmul.f32 %v626, %v1833
      %v1856 = vmul.f32 %v627, %v1833
      %v1857 = vmul.f32 %v628, %v1833
      %v1858 = vmul.f32 %v629, %v1833
      %v1859 = vmul.f32 %v630, %v1833
      %v1860 = vmul.f32 %v631, %v1833
      %v1861 = vmul.f32 %v632, %v1833
      %v1862 = vmul.f32 %v633, %v1833
      %v1863 = vmul.f32 %v634, %v1833
      %v1864 = vmul.f32 %v647, %v1833
      %v1865 = vmul.f32 %v648, %v1833
      %v1866 = vadd.f32 %v1798, %v1834
      %v1867 = vadd.f32 %v1799, %v1835
      %v1868 = vadd.f32 %v1800, %v1836
      %v1869 = vadd.f32 %v1801, %v1837
      %v1870 = vadd.f32 %v1802, %v1838
      %v1871 = vadd.f32 %v1803, %v1839
      %v1872 = vadd.f32 %v1804, %v1840
      %v1873 = vadd.f32 %v1805, %v1841
      %v1874 = vadd.f32 %v1806, %v1842
      %v1875 = vadd.f32 %v1807, %v1843
      %v1876 = vadd.f32 %v1808, %v1844
      %v1877 = vadd.f32 %v1809, %v1845
      %v1878 = vadd.f32 %v1810, %v1846
      %v1879 = vadd.f32 %v1811, %v1847
      %v1880 = vadd.f32 %v1812, %v1848
      %v1881 = vadd.f32 %v1813, %v1849
      %v1882 = vadd.f32 %v1814, %v1850
      %v1883 = vadd.f32 %v1815, %v1851
      %v1884 = vadd.f32 %v1816, %v1852
      %v1885 = vadd.f32 %v1817, %v1853
      %v1886 = vadd.f32 %v1818, %v1854
      %v1887 = vadd.f32 %v1819, %v1855
      %v1888 = vadd.f32 %v1820, %v1856
      %v1889 = vadd.f32 %v1821, %v1857
      %v1890 = vadd.f32 %v1822, %v1858
      %v1891 = vadd.f32 %v1823, %v1859
      %v1892 = vadd.f32 %v1824, %v1860
      %v1893 = vadd.f32 %v1825, %v1861
      %v1894 = vadd.f32 %v1826, %v1862
      %v1895 = vadd.f32 %v1827, %v1863
      %v1896 = vadd.f32 %v1828, %v1864
      %v1897 = vadd.f32 %v1829, %v1865
      %v1898 = vlaneseq
      %v1899 = vshrl.u32 %v1898, 7
      %v1900 = vsub.s32 3, %v1899
      %v1901 = vrot.slane %v906, %v1900
      %v1902 = vmul.f32 %v803, %v1901
      %v1903 = vmul.f32 %v887, %v1901
      %v1904 = vmul.f32 %v806, %v1901
      %v1905 = vmul.f32 %v888, %v1901
      %v1906 = vmul.f32 %v809, %v1901
      %v1907 = vmul.f32 %v889, %v1901
      %v1908 = vmul.f32 %v812, %v1901
      %v1909 = vmul.f32 %v890, %v1901
      %v1910 = vmul.f32 %v815, %v1901
      %v1911 = vmul.f32 %v891, %v1901
      %v1912 = vmul.f32 %v818, %v1901
      %v1913 = vmul.f32 %v892, %v1901
      %v1914 = vmul.f32 %v821, %v1901
      %v1915 = vmul.f32 %v893, %v1901
      %v1916 = vmul.f32 %v824, %v1901
      %v1917 = vmul.f32 %v894, %v1901
      %v1918 = vmul.f32 %v827, %v1901
      %v1919 = vmul.f32 %v895, %v1901
      %v1920 = vmul.f32 %v830, %v1901
      %v1921 = vmul.f32 %v896, %v1901
      %v1922 = vmul.f32 %v833, %v1901
      %v1923 = vmul.f32 %v897, %v1901
      %v1924 = vmul.f32 %v836, %v1901
      %v1925 = vmul.f32 %v898, %v1901
      %v1926 = vmul.f32 %v839, %v1901
      %v1927 = vmul.f32 %v899, %v1901
      %v1928 = vmul.f32 %v842, %v1901
      %v1929 = vmul.f32 %v900, %v1901
      %v1930 = vmul.f32 %v845, %v1901
      %v1931 = vmul.f32 %v901, %v1901
      %v1932 = vmul.f32 %v848, %v1901
      %v1933 = vmul.f32 %v902, %v1901
      %v1934 = vadd.f32 %v1866, %v1902
      %v1935 = vadd.f32 %v1867, %v1903
      %v1936 = vadd.f32 %v1868, %v1904
      %v1937 = vadd.f32 %v1869, %v1905
      %v1938 = vadd.f32 %v1870, %v1906
      %v1939 = vadd.f32 %v1871, %v1907
      %v1940 = vadd.f32 %v1872, %v1908
      %v1941 = vadd.f32 %v1873, %v1909
      %v1942 = vadd.f32 %v1874, %v1910
      %v1943 = vadd.f32 %v1875, %v1911
      %v1944 = vadd.f32 %v1876, %v1912
      %v1945 = vadd.f32 %v1877, %v1913
      %v1946 = vadd.f32 %v1878, %v1914
      %v1947 = vadd.f32 %v1879, %v1915
      %v1948 = vadd.f32 %v1880, %v1916
      %v1949 = vadd.f32 %v1881, %v1917
      %v1950 = vadd.f32 %v1882, %v1918
      %v1951 = vadd.f32 %v1883, %v1919
      %v1952 = vadd.f32 %v1884, %v1920
      %v1953 = vadd.f32 %v1885, %v1921
      %v1954 = vadd.f32 %v1886, %v1922
      %v1955 = vadd.f32 %v1887, %v1923
      %v1956 = vadd.f32 %v1888, %v1924
      %v1957 = vadd.f32 %v1889, %v1925
      %v1958 = vadd.f32 %v1890, %v1926
      %v1959 = vadd.f32 %v1891, %v1927
      %v1960 = vadd.f32 %v1892, %v1928
      %v1961 = vadd.f32 %v1893, %v1929
      %v1962 = vadd.f32 %v1894, %v1930
      %v1963 = vadd.f32 %v1895, %v1931
      %v1964 = vadd.f32 %v1896, %v1932
      %v1965 = vadd.f32 %v1897, %v1933
      %s1966 = scalar_lea.vmem %s427, 768
      %1967 = vst.msk [vmem:[%s1966] sm:$0xff] %vm1147, %v1934
      %1968 = vst.msk [vmem:[%s1966 + $0x8] sm:$0xff] %vm1147, %v1935
      %1969 = vst.msk [vmem:[%s1966 + $0x10] sm:$0xff] %vm1147, %v1936
      %1970 = vst.msk [vmem:[%s1966 + $0x18] sm:$0xff] %vm1147, %v1937
      %1971 = vst.msk [vmem:[%s1966 + $0x20] sm:$0xff] %vm1147, %v1938
      %1972 = vst.msk [vmem:[%s1966 + $0x28] sm:$0xff] %vm1147, %v1939
      %1973 = vst.msk [vmem:[%s1966 + $0x30] sm:$0xff] %vm1147, %v1940
      %1974 = vst.msk [vmem:[%s1966 + $0x38] sm:$0xff] %vm1147, %v1941
      %1975 = vst.msk [vmem:[%s1966 + $0x40] sm:$0xff] %vm1147, %v1942
      %1976 = vst.msk [vmem:[%s1966 + $0x48] sm:$0xff] %vm1147, %v1943
      %1977 = vst.msk [vmem:[%s1966 + $0x50] sm:$0xff] %vm1147, %v1944
      %1978 = vst.msk [vmem:[%s1966 + $0x58] sm:$0xff] %vm1147, %v1945
      %1979 = vst.msk [vmem:[%s1966 + $0x60] sm:$0xff] %vm1147, %v1946
      %1980 = vst.msk [vmem:[%s1966 + $0x68] sm:$0xff] %vm1147, %v1947
      %1981 = vst.msk [vmem:[%s1966 + $0x70] sm:$0xff] %vm1147, %v1948
      %1982 = vst.msk [vmem:[%s1966 + $0x78] sm:$0xff] %vm1147, %v1949
      %1983 = vst.msk [vmem:[%s1966 + $0x80] sm:$0xff] %vm1147, %v1950
      %1984 = vst.msk [vmem:[%s1966 + $0x88] sm:$0xff] %vm1147, %v1951
      %1985 = vst.msk [vmem:[%s1966 + $0x90] sm:$0xff] %vm1147, %v1952
      %1986 = vst.msk [vmem:[%s1966 + $0x98] sm:$0xff] %vm1147, %v1953
      %1987 = vst.msk [vmem:[%s1966 + $0xa0] sm:$0xff] %vm1147, %v1954
      %1988 = vst.msk [vmem:[%s1966 + $0xa8] sm:$0xff] %vm1147, %v1955
      %1989 = vst.msk [vmem:[%s1966 + $0xb0] sm:$0xff] %vm1147, %v1956
      %1990 = vst.msk [vmem:[%s1966 + $0xb8] sm:$0xff] %vm1147, %v1957
      %1991 = vst.msk [vmem:[%s1966 + $0xc0] sm:$0xff] %vm1147, %v1958
      %1992 = vst.msk [vmem:[%s1966 + $0xc8] sm:$0xff] %vm1147, %v1959
      %1993 = vst.msk [vmem:[%s1966 + $0xd0] sm:$0xff] %vm1147, %v1960
      %1994 = vst.msk [vmem:[%s1966 + $0xd8] sm:$0xff] %vm1147, %v1961
      %1995 = vst.msk [vmem:[%s1966 + $0xe0] sm:$0xff] %vm1147, %v1962
      %1996 = vst.msk [vmem:[%s1966 + $0xe8] sm:$0xff] %vm1147, %v1963
      %1997 = vst.msk [vmem:[%s1966 + $0xf0] sm:$0xff] %vm1147, %v1964
      %1998 = vst.msk [vmem:[%s1966 + $0xf8] sm:$0xff] %vm1147, %v1965
      %s1999 = smul.u32 16, %s20
      %p2000 = scmp.lt.s32.totalorder %s19, 1
      %s2001 = scalar_select %p2000, %s19, 1
      %p2002 = scmp.lt.s32.totalorder %s1999, 15
      %s2003 = scalar_select %p2002, %s1999, 15
      %p2004 = scmp.lt.s32.totalorder %s18, 0
      %s2005 = scalar_select %p2004, %s18, 0
      %s2006 = smul.addr %s2003, 2
      %s2007 = sadd.s32 %s2005, %s2006
      %s2008 = smul.addr %s2001, 128
      %s2009 = sadd.s32 %s2007, %s2008
      %s2010 = smul.addr %s2009, 8
      %s2011 = scalar_lea.vmem %s2, %s2010
      // Predicated region
      $region37: #{learned_up_unit.2} parent=35 // pred_check
        %p2012 = pneg %p186
      $region38: #{learned_up_unit.2} parent=35 // pred_check_branch
        %2014 = sbr.rel (%p2012) target = $region40
      $region39: #{learned_up_unit.2} parent=35 // pred_region
        %s2015 = smul.u32 16, %s20
      $region40: #{learned_up_unit.2} parent=35 // pred_fallthru
        _
    $region36: #{learned_up_unit.2} parent=5 // pred_fallthru
      _
    %p2016 = scmp.le.s32.totalorder 2, %s8
    // Predicated region
    $region41: #{learned_up_unit.2} parent=5 // pred_check
      %p2017 = pneg %p2016
    $region42: #{learned_up_unit.2} parent=5 // pred_check_branch
      %2019 = sbr.rel (%p2017) target = $region44
    $region43: #{learned_up_unit.2} parent=5 // pred_region
      %s2020 = ssub.s32 %s8, 2
      // Predicated region
      $region45: #{learned_up_unit.2} parent=43 // pred_check
        %p2021 = pneg %p192
      $region46: #{learned_up_unit.2} parent=43 // pred_check_branch
        %2023 = sbr.rel (%p2021) target = $region48
      $region47: #{learned_up_unit.2} parent=43 // pred_region
        %s2024 = smul.u32 16, %s23
        %p2025 = scmp.lt.s32.totalorder %s22, 1
        %s2026 = scalar_select %p2025, %s22, 1
        %p2027 = scmp.lt.s32.totalorder %s2024, 15
        %s2028 = scalar_select %p2027, %s2024, 15
        %p2029 = scmp.lt.s32.totalorder %s21, 0
        %s2030 = scalar_select %p2029, %s21, 0
        %s2031 = smul.addr %s2028, 2
        %s2032 = sadd.s32 %s2030, %s2031
        %s2033 = smul.addr %s2026, 128
        %s2034 = sadd.s32 %s2032, %s2033
        %s2035 = smul.addr %s2034, 8
        %s2036 = scalar_lea.vmem %s2, %s2035
      $region48: #{learned_up_unit.2} parent=43 // pred_fallthru
        _
    $region44: #{learned_up_unit.2} parent=5 // pred_fallthru
      _
  $region6: #{learned_up_unit.2} parent=0 // loop_footer
    %s12 = sadd.s32 1, %s8
  $region7: #{learned_up_unit.2} parent=0 // loop_footer_branch
    %7 = sbr.rel target = $region3
  $region8: #{learned_up_unit.2} parent=0 // loop_exit
    _

</llo_original>
